<compile_context>
chip_gen: v5e
topology: v5e:2x2
jax: 0.10.0
libtpu: 0.0.40
codegen_flags: <defaults>
</compile_context>

<pallas_src>
import functools

import jax
import jax.numpy as jnp
from jax.experimental import pallas as pl
from jax.experimental.pallas import tpu as pltpu

NODE = 128
IN_FEATURES = 44
OUT_FEATURES = 3
N_HIDDEN_BLOCKS = 13       # (linear, batch[, dropout], relu) repeats in the Sequential
PACK = 128                 # lane-dense width per original row (44->128 in, 3->128 out)


def _round_up(x, m):
    return ((x + m - 1) // m) * m


def _mxu_is_256():
    """True for v6e / v7x class chips (256x256 MXU); False for v5e and older/unknown."""
    try:
        kind = jax.devices()[0].device_kind.lower()
    except Exception:
        return False
    return ("v6" in kind) or ("v7" in kind) or ("7x" in kind)


# ---------------------------------------------------------------------------
# Kernels
# ---------------------------------------------------------------------------
def ann_kernel_plain(x_ref, w_in_ref, b_in_ref, w_h_ref, b_h_ref,
                     w_out_ref, b_out_ref, o_ref):
    """128-wide layout (v5e and fallback). Two independent half-tile chains are
    interleaved so one chain's matmul overlaps the other's bias+ReLU / MRF drain."""
    w_in = w_in_ref[...]          # bf16 [128, 128] (rows 44.. are zero)
    b_in = b_in_ref[...]          # f32  [1, 128]
    w_h = w_h_ref[...]            # bf16 [128, 128] (eval-BN folded in)
    b_h = b_h_ref[...]            # f32  [1, 128]
    w_out = w_out_ref[...]        # bf16 [128, 128] (cols 3.. are zero)
    b_out = b_out_ref[...]        # f32  [1, 128]

    half = x_ref.shape[0] // 2    # static; tb is a multiple of 32 -> half % 16 == 0
    x0 = x_ref[:half, :]          # bf16
    x1 = x_ref[half:, :]

    # input_layer (no activation before the first hidden block)
    h0 = (jnp.dot(x0, w_in, preferred_element_type=jnp.float32) + b_in).astype(jnp.bfloat16)
    h1 = (jnp.dot(x1, w_in, preferred_element_type=jnp.float32) + b_in).astype(jnp.bfloat16)

    # hidden_layer: 13x the SAME (linear + folded eval-BN + relu); dropout = identity.
    for _ in range(N_HIDDEN_BLOCKS):
        z0 = jnp.dot(h0, w_h, preferred_element_type=jnp.float32)
        z1 = jnp.dot(h1, w_h, preferred_element_type=jnp.float32)
        h0 = jnp.maximum(z0 + b_h, 0.0).astype(jnp.bfloat16)
        h1 = jnp.maximum(z1 + b_h, 0.0).astype(jnp.bfloat16)

    # output_layer (lane-dense 128-wide bf16 store; wrapper slices [:, :3])
    o_ref[:half, :] = (jnp.dot(h0, w_out, preferred_element_type=jnp.float32)
                       + b_out).astype(o_ref.dtype)
    o_ref[half:, :] = (jnp.dot(h1, w_out, preferred_element_type=jnp.float32)
                       + b_out).astype(o_ref.dtype)


def ann_kernel_packed(x_ref, w_in_ref, b_in_ref, w_h_ref, b_h_ref,
                      w_out_ref, b_out_ref, o_ref):
    """256-wide layout (v6e / v7x). Two batch rows ride side-by-side in lanes and the
    weights are block-diagonal, so every layer is one MXU-filling [.,256]x[256,256] dot."""
    w_in = w_in_ref[...]          # bf16 [256, 256] block-diag (rows 44..128 / 172..256 zero)
    b_in = b_in_ref[...]          # f32  [1, 256]
    w_h = w_h_ref[...]            # bf16 [256, 256] block-diag (eval-BN folded)
    b_h = b_h_ref[...]            # f32  [1, 256]
    w_out = w_out_ref[...]        # bf16 [256, 256] block-diag (only 3 useful cols per half)
    b_out = b_out_ref[...]        # f32  [1, 256]

    x = x_ref[...]                # bf16 [tb//2, 256]
    h = (jnp.dot(x, w_in, preferred_element_type=jnp.float32) + b_in).astype(jnp.bfloat16)
    for _ in range(N_HIDDEN_BLOCKS):
        z = jnp.dot(h, w_h, preferred_element_type=jnp.float32)
        h = jnp.maximum(z + b_h, 0.0).astype(jnp.bfloat16)
    o_ref[...] = (jnp.dot(h, w_out, preferred_element_type=jnp.float32)
                  + b_out).astype(o_ref.dtype)


# ---------------------------------------------------------------------------
# Host wrapper
# ---------------------------------------------------------------------------
@functools.partial(jax.jit, static_argnames=("tile_b",))
def ann_forward(x, kparams, tile_b=1024):
    """x: [B, 44] f32.  kparams: output of prepare_params().  Returns [B, 3] f32."""
    w_in, b_in, w_h, b_h, w_out, b_out = kparams
    packed = (w_h.shape[-1] == 2 * NODE)   # 256-wide block-diag layout?
    B = x.shape[0]

    # Batch tile: multiple of 32 (so half-tiles stay bf16-sublane aligned), capped at
    # ceil(B/2) so the grid has >=2 steps whenever B > 32 (v7x megacore sharding).
    half_b = _round_up(max((B + 1) // 2, 1), 32)
    tb = min(_round_up(int(tile_b), 32), half_b)
    b_pad = _round_up(B, tb)
    grid = (b_pad // tb,)

    # Pad batch B -> b_pad and features 44 -> 128, cast to bf16 (single producer op).
    xp = jnp.zeros((b_pad, PACK), jnp.bfloat16)
    xp = xp.at[:B, :IN_FEATURES].set(x.astype(jnp.bfloat16))

    cp = pltpu.CompilerParams(dimension_semantics=("parallel",))

    if packed:
        # Row pairs -> lane halves: [b_pad, 128] -> [b_pad//2, 256] (free row-major view).
        xp = xp.reshape(b_pad // 2, 2 * PACK)
        rows, width, kernel = tb // 2, 2 * PACK, ann_kernel_packed
    else:
        rows, width, kernel = tb, PACK, ann_kernel_plain

    out = pl.pallas_call(
        kernel,
        out_shape=jax.ShapeDtypeStruct((xp.shape[0], width), jnp.bfloat16),
        grid=grid,
        in_specs=[
            pl.BlockSpec((rows, width), lambda i: (i, 0)),     # x tile (pipelined)
            pl.BlockSpec(w_in.shape, lambda i: (0, 0)),        # w_in  (VMEM-resident)
            pl.BlockSpec(b_in.shape, lambda i: (0, 0)),        # b_in
            pl.BlockSpec(w_h.shape, lambda i: (0, 0)),         # w_h (BN folded)
            pl.BlockSpec(b_h.shape, lambda i: (0, 0)),         # b_h (BN folded)
            pl.BlockSpec(w_out.shape, lambda i: (0, 0)),       # w_out
            pl.BlockSpec(b_out.shape, lambda i: (0, 0)),       # b_out
        ],
        out_specs=pl.BlockSpec((rows, width), lambda i: (i, 0)),
        compiler_params=cp,
    )(xp, w_in, b_in, w_h, b_h, w_out, b_out)

    out = out.reshape(b_pad, PACK)                 # un-pack row pairs (no-op if plain)
    return out[:B, :OUT_FEATURES].astype(jnp.float32)


# ---------------------------------------------------------------------------
# Parameters (match torch init of the module) + kernel-layout preparation
# ---------------------------------------------------------------------------
def kaiming_uniform(key, fan_in, shape):
    # torch.nn.init.kaiming_uniform_ (a=0, leaky_relu): bound = sqrt(6 / fan_in)
    bound = jnp.sqrt(6.0 / fan_in)
    return jax.random.uniform(key, shape, jnp.float32, -bound, bound)


def linear_bias(key, fan_in, shape):
    # torch default Linear bias init: U(-1/sqrt(fan_in), 1/sqrt(fan_in))
    bound = 1.0 / jnp.sqrt(fan_in)
    return jax.random.uniform(key, shape, jnp.float32, -bound, bound)


def make_params(key):
    """Raw f32 params; weights stored [in, out] (transposed vs torch)."""
    k = jax.random.split(key, 6)
    w_in = kaiming_uniform(k[0], IN_FEATURES, (IN_FEATURES, NODE))
    b_in = linear_bias(k[1], IN_FEATURES, (1, NODE))
    w_h = kaiming_uniform(k[2], NODE, (NODE, NODE))
    b_h = linear_bias(k[3], NODE, (1, NODE))
    w_out = kaiming_uniform(k[4], NODE, (NODE, OUT_FEATURES))
    b_out = linear_bias(k[5], NODE, (1, OUT_FEATURES))

    # BatchNorm1d(128), eval mode, init stats: gamma=1, beta=0, mean=0, var=1, eps=1e-5
    gamma = jnp.ones((1, NODE), jnp.float32)
    beta = jnp.zeros((1, NODE), jnp.float32)
    running_mean = jnp.zeros((1, NODE), jnp.float32)
    running_var = jnp.ones((1, NODE), jnp.float32)
    eps = 1e-5
    bn_scale = gamma / jnp.sqrt(running_var + eps)
    bn_shift = beta - running_mean * bn_scale
    return w_in, b_in, w_h, b_h, bn_scale, bn_shift, w_out, b_out


def prepare_params(params, packed=None):
    """Fold eval-mode BN into the shared hidden layer, pad to lane-dense shapes, cast
    matmul weights to bf16. packed=True builds the 256-wide block-diagonal layout
    (v6e / v7x); packed=None auto-selects from the local device."""
    if packed is None:
        packed = _mxu_is_256()
    w_in, b_in, w_h, b_h, bn_scale, bn_shift, w_out, b_out = params

    # Fold BN (per output feature) into the shared hidden linear: exact, in f32.
    w_h_f = w_h * bn_scale
    b_h_f = b_h * bn_scale + bn_shift

    # Input features 44 -> 128 (zero rows) and output logits 3 -> 128 (zero cols).
    w_in_p = jnp.zeros((PACK, NODE), jnp.float32).at[:IN_FEATURES, :].set(w_in)
    w_out_p = jnp.zeros((NODE, PACK), jnp.float32).at[:, :OUT_FEATURES].set(w_out)
    b_out_p = jnp.zeros((1, PACK), jnp.float32).at[:, :OUT_FEATURES].set(b_out)

    if not packed:
        return (w_in_p.astype(jnp.bfloat16), b_in,
                w_h_f.astype(jnp.bfloat16), b_h_f,
                w_out_p.astype(jnp.bfloat16), b_out_p)

    def blkdiag2(w):
        r, c = w.shape
        z = jnp.zeros((2 * r, 2 * c), jnp.float32)
        return z.at[:r, :c].set(w).at[r:, c:].set(w)

    def cc2(b):
        return jnp.concatenate([b, b], axis=1)

    return (blkdiag2(w_in_p).astype(jnp.bfloat16), cc2(b_in),
            blkdiag2(w_h_f).astype(jnp.bfloat16), cc2(b_h_f),
            blkdiag2(w_out_p).astype(jnp.bfloat16), cc2(b_out_p))


# ---------------------------------------------------------------------------
# References
# ---------------------------------------------------------------------------
def ann_reference_f32(x, params):
    w_in, b_in, w_h, b_h, bn_scale, bn_shift, w_out, b_out = params
    h = x @ w_in + b_in
    for _ in range(N_HIDDEN_BLOCKS):
        z = (h @ w_h + b_h) * bn_scale + bn_shift
        h = jnp.maximum(z, 0.0)
    return h @ w_out + b_out


def ann_reference_bf16(x, params):
    """Pure-JAX reference with the same bf16-operand / f32-accumulation scheme."""
    w_in, b_in, w_h, b_h, bn_scale, bn_shift, w_out, b_out = params
    w_h_f = (w_h * bn_scale).astype(jnp.bfloat16)
    b_h_f = b_h * bn_scale + bn_shift
    h = (jnp.dot(x.astype(jnp.bfloat16), w_in.astype(jnp.bfloat16),
                 preferred_element_type=jnp.float32) + b_in).astype(jnp.bfloat16)
    for _ in range(N_HIDDEN_BLOCKS):
        z = jnp.dot(h, w_h_f, preferred_element_type=jnp.float32) + b_h_f
        h = jnp.maximum(z, 0.0).astype(jnp.bfloat16)
    out = jnp.dot(h, w_out.astype(jnp.bfloat16),
                  preferred_element_type=jnp.float32) + b_out
    return out.astype(jnp.bfloat16).astype(jnp.float32)   # kernel stores bf16 output


if __name__ == "__main__":
    key = jax.random.PRNGKey(0)
    k_x, k_p = jax.random.split(key)

    B = 200  # not a multiple of the tile -> exercises batch padding + a 2-step grid
    x = jax.random.normal(k_x, (B, IN_FEATURES), jnp.float32)
    params = make_params(k_p)

    ref_bf16 = ann_reference_bf16(x, params)    # same numerics as the kernel
    ref_f32 = ann_reference_f32(x, params)      # exact-math sanity check

    # Exercise both layouts (128-wide plain / 256-wide block-diag packed) so the code
    # path for every TPU generation is compile- and correctness-checked here.
    for packed in (False, True):
        kparams = prepare_params(params, packed=packed)
        out = jax.block_until_ready(ann_forward(x, kparams))
        assert out.shape == (B, OUT_FEATURES)
        assert jnp.allclose(out, ref_bf16, atol=2e-2, rtol=2e-2), \
            f"Pallas output mismatch vs bf16 reference (packed={packed})"
        assert jnp.allclose(out, ref_f32, atol=1e-1, rtol=1e-1), \
            f"Pallas output mismatch vs f32 reference (packed={packed})"

    print("KERNEL_OK")
</pallas_src>

<mosaic_0001>
module attributes {stable_mosaic.version = 11 : i64} {
  func.func @ann_kernel_plain(%arg0: i32, %arg1: memref<128x128xbf16, #tpu.memory_space<vmem>>, %arg2: memref<128x128xbf16, #tpu.memory_space<vmem>>, %arg3: memref<1x128xf32, #tpu.memory_space<vmem>>, %arg4: memref<128x128xbf16, #tpu.memory_space<vmem>>, %arg5: memref<1x128xf32, #tpu.memory_space<vmem>>, %arg6: memref<128x128xbf16, #tpu.memory_space<vmem>>, %arg7: memref<1x128xf32, #tpu.memory_space<vmem>>, %arg8: memref<128x128xbf16, #tpu.memory_space<vmem>>) attributes {dimension_semantics = [#tpu.dimension_semantics<parallel>], iteration_bounds = array<i64: 2>, scalar_prefetch = 0 : i64, scratch_operands = 0 : i64, tpu.core_type = #tpu.core_type<tc>, window_params = [{transform_indices = @transform_0, window_bounds = array<i64: 128, 128>}, {pipeline_mode = #tpu.pipeline_mode<synchronous>, transform_indices = @transform_1, window_bounds = array<i64: 128, 128>}, {pipeline_mode = #tpu.pipeline_mode<synchronous>, transform_indices = @transform_2, window_bounds = array<i64: 1, 128>}, {pipeline_mode = #tpu.pipeline_mode<synchronous>, transform_indices = @transform_3, window_bounds = array<i64: 128, 128>}, {pipeline_mode = #tpu.pipeline_mode<synchronous>, transform_indices = @transform_4, window_bounds = array<i64: 1, 128>}, {pipeline_mode = #tpu.pipeline_mode<synchronous>, transform_indices = @transform_5, window_bounds = array<i64: 128, 128>}, {pipeline_mode = #tpu.pipeline_mode<synchronous>, transform_indices = @transform_6, window_bounds = array<i64: 1, 128>}, {transform_indices = @transform_7, window_bounds = array<i64: 128, 128>}]} {
    %c0 = arith.constant 0 : index
    %c0_0 = arith.constant 0 : index
    %0 = vector.load %arg2[%c0, %c0_0] : memref<128x128xbf16, #tpu.memory_space<vmem>>, vector<128x128xbf16>
    %c0_1 = arith.constant 0 : index
    %c0_2 = arith.constant 0 : index
    %1 = vector.load %arg3[%c0_1, %c0_2] : memref<1x128xf32, #tpu.memory_space<vmem>>, vector<1x128xf32>
    %c0_3 = arith.constant 0 : index
    %c0_4 = arith.constant 0 : index
    %2 = vector.load %arg4[%c0_3, %c0_4] : memref<128x128xbf16, #tpu.memory_space<vmem>>, vector<128x128xbf16>
    %c0_5 = arith.constant 0 : index
    %c0_6 = arith.constant 0 : index
    %3 = vector.load %arg5[%c0_5, %c0_6] : memref<1x128xf32, #tpu.memory_space<vmem>>, vector<1x128xf32>
    %c0_7 = arith.constant 0 : index
    %c0_8 = arith.constant 0 : index
    %4 = vector.load %arg6[%c0_7, %c0_8] : memref<128x128xbf16, #tpu.memory_space<vmem>>, vector<128x128xbf16>
    %c0_9 = arith.constant 0 : index
    %c0_10 = arith.constant 0 : index
    %5 = vector.load %arg7[%c0_9, %c0_10] : memref<1x128xf32, #tpu.memory_space<vmem>>, vector<1x128xf32>
    %c0_11 = arith.constant 0 : index
    %c0_12 = arith.constant 0 : index
    %6 = vector.load %arg1[%c0_11, %c0_12] : memref<128x128xbf16, #tpu.memory_space<vmem>>, vector<64x128xbf16>
    %c64 = arith.constant 64 : index
    %c0_13 = arith.constant 0 : index
    %7 = vector.load %arg1[%c64, %c0_13] : memref<128x128xbf16, #tpu.memory_space<vmem>>, vector<64x128xbf16>
    %cst = arith.constant dense<0.000000e+00> : vector<64x128xf32>
    %8 = tpu.matmul %6, %0, %cst {dimension_numbers = #tpu.dot_dimension_numbers<[1], [0], [0], [1], [0, 0, 1, 1], [], []>} : vector<64x128xbf16>, vector<128x128xbf16>, vector<64x128xf32> -> vector<64x128xf32>
    %9 = vector.broadcast %1 : vector<1x128xf32> to vector<64x128xf32>
    %10 = arith.addf %8, %9 : vector<64x128xf32>
    %11 = arith.truncf %10 : vector<64x128xf32> to vector<64x128xbf16>
    %cst_14 = arith.constant dense<0.000000e+00> : vector<64x128xf32>
    %12 = tpu.matmul %7, %0, %cst_14 {dimension_numbers = #tpu.dot_dimension_numbers<[1], [0], [0], [1], [0, 0, 1, 1], [], []>} : vector<64x128xbf16>, vector<128x128xbf16>, vector<64x128xf32> -> vector<64x128xf32>
    %13 = vector.broadcast %1 : vector<1x128xf32> to vector<64x128xf32>
    %14 = arith.addf %12, %13 : vector<64x128xf32>
    %15 = arith.truncf %14 : vector<64x128xf32> to vector<64x128xbf16>
    %cst_15 = arith.constant dense<0.000000e+00> : vector<64x128xf32>
    %16 = tpu.matmul %11, %2, %cst_15 {dimension_numbers = #tpu.dot_dimension_numbers<[1], [0], [0], [1], [0, 0, 1, 1], [], []>} : vector<64x128xbf16>, vector<128x128xbf16>, vector<64x128xf32> -> vector<64x128xf32>
    %cst_16 = arith.constant dense<0.000000e+00> : vector<64x128xf32>
    %17 = tpu.matmul %15, %2, %cst_16 {dimension_numbers = #tpu.dot_dimension_numbers<[1], [0], [0], [1], [0, 0, 1, 1], [], []>} : vector<64x128xbf16>, vector<128x128xbf16>, vector<64x128xf32> -> vector<64x128xf32>
    %18 = vector.broadcast %3 : vector<1x128xf32> to vector<64x128xf32>
    %19 = arith.addf %16, %18 : vector<64x128xf32>
    %cst_17 = arith.constant 0.000000e+00 : f32
    %20 = vector.broadcast %cst_17 : f32 to vector<64x128xf32>
    %21 = arith.maximumf %19, %20 : vector<64x128xf32>
    %22 = arith.truncf %21 : vector<64x128xf32> to vector<64x128xbf16>
    %23 = vector.broadcast %3 : vector<1x128xf32> to vector<64x128xf32>
    %24 = arith.addf %17, %23 : vector<64x128xf32>
    %cst_18 = arith.constant 0.000000e+00 : f32
    %25 = vector.broadcast %cst_18 : f32 to vector<64x128xf32>
    %26 = arith.maximumf %24, %25 : vector<64x128xf32>
    %27 = arith.truncf %26 : vector<64x128xf32> to vector<64x128xbf16>
    %cst_19 = arith.constant dense<0.000000e+00> : vector<64x128xf32>
    %28 = tpu.matmul %22, %2, %cst_19 {dimension_numbers = #tpu.dot_dimension_numbers<[1], [0], [0], [1], [0, 0, 1, 1], [], []>} : vector<64x128xbf16>, vector<128x128xbf16>, vector<64x128xf32> -> vector<64x128xf32>
    %cst_20 = arith.constant dense<0.000000e+00> : vector<64x128xf32>
    %29 = tpu.matmul %27, %2, %cst_20 {dimension_numbers = #tpu.dot_dimension_numbers<[1], [0], [0], [1], [0, 0, 1, 1], [], []>} : vector<64x128xbf16>, vector<128x128xbf16>, vector<64x128xf32> -> vector<64x128xf32>
    %30 = vector.broadcast %3 : vector<1x128xf32> to vector<64x128xf32>
    %31 = arith.addf %28, %30 : vector<64x128xf32>
    %cst_21 = arith.constant 0.000000e+00 : f32
    %32 = vector.broadcast %cst_21 : f32 to vector<64x128xf32>
    %33 = arith.maximumf %31, %32 : vector<64x128xf32>
    %34 = arith.truncf %33 : vector<64x128xf32> to vector<64x128xbf16>
    %35 = vector.broadcast %3 : vector<1x128xf32> to vector<64x128xf32>
    %36 = arith.addf %29, %35 : vector<64x128xf32>
    %cst_22 = arith.constant 0.000000e+00 : f32
    %37 = vector.broadcast %cst_22 : f32 to vector<64x128xf32>
    %38 = arith.maximumf %36, %37 : vector<64x128xf32>
    %39 = arith.truncf %38 : vector<64x128xf32> to vector<64x128xbf16>
    %cst_23 = arith.constant dense<0.000000e+00> : vector<64x128xf32>
    %40 = tpu.matmul %34, %2, %cst_23 {dimension_numbers = #tpu.dot_dimension_numbers<[1], [0], [0], [1], [0, 0, 1, 1], [], []>} : vector<64x128xbf16>, vector<128x128xbf16>, vector<64x128xf32> -> vector<64x128xf32>
    %cst_24 = arith.constant dense<0.000000e+00> : vector<64x128xf32>
    %41 = tpu.matmul %39, %2, %cst_24 {dimension_numbers = #tpu.dot_dimension_numbers<[1], [0], [0], [1], [0, 0, 1, 1], [], []>} : vector<64x128xbf16>, vector<128x128xbf16>, vector<64x128xf32> -> vector<64x128xf32>
    %42 = vector.broadcast %3 : vector<1x128xf32> to vector<64x128xf32>
    %43 = arith.addf %40, %42 : vector<64x128xf32>
    %cst_25 = arith.constant 0.000000e+00 : f32
    %44 = vector.broadcast %cst_25 : f32 to vector<64x128xf32>
    %45 = arith.maximumf %43, %44 : vector<64x128xf32>
    %46 = arith.truncf %45 : vector<64x128xf32> to vector<64x128xbf16>
    %47 = vector.broadcast %3 : vector<1x128xf32> to vector<64x128xf32>
    %48 = arith.addf %41, %47 : vector<64x128xf32>
    %cst_26 = arith.constant 0.000000e+00 : f32
    %49 = vector.broadcast %cst_26 : f32 to vector<64x128xf32>
    %50 = arith.maximumf %48, %49 : vector<64x128xf32>
    %51 = arith.truncf %50 : vector<64x128xf32> to vector<64x128xbf16>
    %cst_27 = arith.constant dense<0.000000e+00> : vector<64x128xf32>
    %52 = tpu.matmul %46, %2, %cst_27 {dimension_numbers = #tpu.dot_dimension_numbers<[1], [0], [0], [1], [0, 0, 1, 1], [], []>} : vector<64x128xbf16>, vector<128x128xbf16>, vector<64x128xf32> -> vector<64x128xf32>
    %cst_28 = arith.constant dense<0.000000e+00> : vector<64x128xf32>
    %53 = tpu.matmul %51, %2, %cst_28 {dimension_numbers = #tpu.dot_dimension_numbers<[1], [0], [0], [1], [0, 0, 1, 1], [], []>} : vector<64x128xbf16>, vector<128x128xbf16>, vector<64x128xf32> -> vector<64x128xf32>
    %54 = vector.broadcast %3 : vector<1x128xf32> to vector<64x128xf32>
    %55 = arith.addf %52, %54 : vector<64x128xf32>
    %cst_29 = arith.constant 0.000000e+00 : f32
    %56 = vector.broadcast %cst_29 : f32 to vector<64x128xf32>
    %57 = arith.maximumf %55, %56 : vector<64x128xf32>
    %58 = arith.truncf %57 : vector<64x128xf32> to vector<64x128xbf16>
    %59 = vector.broadcast %3 : vector<1x128xf32> to vector<64x128xf32>
    %60 = arith.addf %53, %59 : vector<64x128xf32>
    %cst_30 = arith.constant 0.000000e+00 : f32
    %61 = vector.broadcast %cst_30 : f32 to vector<64x128xf32>
    %62 = arith.maximumf %60, %61 : vector<64x128xf32>
    %63 = arith.truncf %62 : vector<64x128xf32> to vector<64x128xbf16>
    %cst_31 = arith.constant dense<0.000000e+00> : vector<64x128xf32>
    %64 = tpu.matmul %58, %2, %cst_31 {dimension_numbers = #tpu.dot_dimension_numbers<[1], [0], [0], [1], [0, 0, 1, 1], [], []>} : vector<64x128xbf16>, vector<128x128xbf16>, vector<64x128xf32> -> vector<64x128xf32>
    %cst_32 = arith.constant dense<0.000000e+00> : vector<64x128xf32>
    %65 = tpu.matmul %63, %2, %cst_32 {dimension_numbers = #tpu.dot_dimension_numbers<[1], [0], [0], [1], [0, 0, 1, 1], [], []>} : vector<64x128xbf16>, vector<128x128xbf16>, vector<64x128xf32> -> vector<64x128xf32>
    %66 = vector.broadcast %3 : vector<1x128xf32> to vector<64x128xf32>
    %67 = arith.addf %64, %66 : vector<64x128xf32>
    %cst_33 = arith.constant 0.000000e+00 : f32
    %68 = vector.broadcast %cst_33 : f32 to vector<64x128xf32>
    %69 = arith.maximumf %67, %68 : vector<64x128xf32>
    %70 = arith.truncf %69 : vector<64x128xf32> to vector<64x128xbf16>
    %71 = vector.broadcast %3 : vector<1x128xf32> to vector<64x128xf32>
    %72 = arith.addf %65, %71 : vector<64x128xf32>
    %cst_34 = arith.constant 0.000000e+00 : f32
    %73 = vector.broadcast %cst_34 : f32 to vector<64x128xf32>
    %74 = arith.maximumf %72, %73 : vector<64x128xf32>
    %75 = arith.truncf %74 : vector<64x128xf32> to vector<64x128xbf16>
    %cst_35 = arith.constant dense<0.000000e+00> : vector<64x128xf32>
    %76 = tpu.matmul %70, %2, %cst_35 {dimension_numbers = #tpu.dot_dimension_numbers<[1], [0], [0], [1], [0, 0, 1, 1], [], []>} : vector<64x128xbf16>, vector<128x128xbf16>, vector<64x128xf32> -> vector<64x128xf32>
    %cst_36 = arith.constant dense<0.000000e+00> : vector<64x128xf32>
    %77 = tpu.matmul %75, %2, %cst_36 {dimension_numbers = #tpu.dot_dimension_numbers<[1], [0], [0], [1], [0, 0, 1, 1], [], []>} : vector<64x128xbf16>, vector<128x128xbf16>, vector<64x128xf32> -> vector<64x128xf32>
    %78 = vector.broadcast %3 : vector<1x128xf32> to vector<64x128xf32>
    %79 = arith.addf %76, %78 : vector<64x128xf32>
    %cst_37 = arith.constant 0.000000e+00 : f32
    %80 = vector.broadcast %cst_37 : f32 to vector<64x128xf32>
    %81 = arith.maximumf %79, %80 : vector<64x128xf32>
    %82 = arith.truncf %81 : vector<64x128xf32> to vector<64x128xbf16>
    %83 = vector.broadcast %3 : vector<1x128xf32> to vector<64x128xf32>
    %84 = arith.addf %77, %83 : vector<64x128xf32>
    %cst_38 = arith.constant 0.000000e+00 : f32
    %85 = vector.broadcast %cst_38 : f32 to vector<64x128xf32>
    %86 = arith.maximumf %84, %85 : vector<64x128xf32>
    %87 = arith.truncf %86 : vector<64x128xf32> to vector<64x128xbf16>
    %cst_39 = arith.constant dense<0.000000e+00> : vector<64x128xf32>
    %88 = tpu.matmul %82, %2, %cst_39 {dimension_numbers = #tpu.dot_dimension_numbers<[1], [0], [0], [1], [0, 0, 1, 1], [], []>} : vector<64x128xbf16>, vector<128x128xbf16>, vector<64x128xf32> -> vector<64x128xf32>
    %cst_40 = arith.constant dense<0.000000e+00> : vector<64x128xf32>
    %89 = tpu.matmul %87, %2, %cst_40 {dimension_numbers = #tpu.dot_dimension_numbers<[1], [0], [0], [1], [0, 0, 1, 1], [], []>} : vector<64x128xbf16>, vector<128x128xbf16>, vector<64x128xf32> -> vector<64x128xf32>
    %90 = vector.broadcast %3 : vector<1x128xf32> to vector<64x128xf32>
    %91 = arith.addf %88, %90 : vector<64x128xf32>
    %cst_41 = arith.constant 0.000000e+00 : f32
    %92 = vector.broadcast %cst_41 : f32 to vector<64x128xf32>
    %93 = arith.maximumf %91, %92 : vector<64x128xf32>
    %94 = arith.truncf %93 : vector<64x128xf32> to vector<64x128xbf16>
    %95 = vector.broadcast %3 : vector<1x128xf32> to vector<64x128xf32>
    %96 = arith.addf %89, %95 : vector<64x128xf32>
    %cst_42 = arith.constant 0.000000e+00 : f32
    %97 = vector.broadcast %cst_42 : f32 to vector<64x128xf32>
    %98 = arith.maximumf %96, %97 : vector<64x128xf32>
    %99 = arith.truncf %98 : vector<64x128xf32> to vector<64x128xbf16>
    %cst_43 = arith.constant dense<0.000000e+00> : vector<64x128xf32>
    %100 = tpu.matmul %94, %2, %cst_43 {dimension_numbers = #tpu.dot_dimension_numbers<[1], [0], [0], [1], [0, 0, 1, 1], [], []>} : vector<64x128xbf16>, vector<128x128xbf16>, vector<64x128xf32> -> vector<64x128xf32>
    %cst_44 = arith.constant dense<0.000000e+00> : vector<64x128xf32>
    %101 = tpu.matmul %99, %2, %cst_44 {dimension_numbers = #tpu.dot_dimension_numbers<[1], [0], [0], [1], [0, 0, 1, 1], [], []>} : vector<64x128xbf16>, vector<128x128xbf16>, vector<64x128xf32> -> vector<64x128xf32>
    %102 = vector.broadcast %3 : vector<1x128xf32> to vector<64x128xf32>
    %103 = arith.addf %100, %102 : vector<64x128xf32>
    %cst_45 = arith.constant 0.000000e+00 : f32
    %104 = vector.broadcast %cst_45 : f32 to vector<64x128xf32>
    %105 = arith.maximumf %103, %104 : vector<64x128xf32>
    %106 = arith.truncf %105 : vector<64x128xf32> to vector<64x128xbf16>
    %107 = vector.broadcast %3 : vector<1x128xf32> to vector<64x128xf32>
    %108 = arith.addf %101, %107 : vector<64x128xf32>
    %cst_46 = arith.constant 0.000000e+00 : f32
    %109 = vector.broadcast %cst_46 : f32 to vector<64x128xf32>
    %110 = arith.maximumf %108, %109 : vector<64x128xf32>
    %111 = arith.truncf %110 : vector<64x128xf32> to vector<64x128xbf16>
    %cst_47 = arith.constant dense<0.000000e+00> : vector<64x128xf32>
    %112 = tpu.matmul %106, %2, %cst_47 {dimension_numbers = #tpu.dot_dimension_numbers<[1], [0], [0], [1], [0, 0, 1, 1], [], []>} : vector<64x128xbf16>, vector<128x128xbf16>, vector<64x128xf32> -> vector<64x128xf32>
    %cst_48 = arith.constant dense<0.000000e+00> : vector<64x128xf32>
    %113 = tpu.matmul %111, %2, %cst_48 {dimension_numbers = #tpu.dot_dimension_numbers<[1], [0], [0], [1], [0, 0, 1, 1], [], []>} : vector<64x128xbf16>, vector<128x128xbf16>, vector<64x128xf32> -> vector<64x128xf32>
    %114 = vector.broadcast %3 : vector<1x128xf32> to vector<64x128xf32>
    %115 = arith.addf %112, %114 : vector<64x128xf32>
    %cst_49 = arith.constant 0.000000e+00 : f32
    %116 = vector.broadcast %cst_49 : f32 to vector<64x128xf32>
    %117 = arith.maximumf %115, %116 : vector<64x128xf32>
    %118 = arith.truncf %117 : vector<64x128xf32> to vector<64x128xbf16>
    %119 = vector.broadcast %3 : vector<1x128xf32> to vector<64x128xf32>
    %120 = arith.addf %113, %119 : vector<64x128xf32>
    %cst_50 = arith.constant 0.000000e+00 : f32
    %121 = vector.broadcast %cst_50 : f32 to vector<64x128xf32>
    %122 = arith.maximumf %120, %121 : vector<64x128xf32>
    %123 = arith.truncf %122 : vector<64x128xf32> to vector<64x128xbf16>
    %cst_51 = arith.constant dense<0.000000e+00> : vector<64x128xf32>
    %124 = tpu.matmul %118, %2, %cst_51 {dimension_numbers = #tpu.dot_dimension_numbers<[1], [0], [0], [1], [0, 0, 1, 1], [], []>} : vector<64x128xbf16>, vector<128x128xbf16>, vector<64x128xf32> -> vector<64x128xf32>
    %cst_52 = arith.constant dense<0.000000e+00> : vector<64x128xf32>
    %125 = tpu.matmul %123, %2, %cst_52 {dimension_numbers = #tpu.dot_dimension_numbers<[1], [0], [0], [1], [0, 0, 1, 1], [], []>} : vector<64x128xbf16>, vector<128x128xbf16>, vector<64x128xf32> -> vector<64x128xf32>
    %126 = vector.broadcast %3 : vector<1x128xf32> to vector<64x128xf32>
    %127 = arith.addf %124, %126 : vector<64x128xf32>
    %cst_53 = arith.constant 0.000000e+00 : f32
    %128 = vector.broadcast %cst_53 : f32 to vector<64x128xf32>
    %129 = arith.maximumf %127, %128 : vector<64x128xf32>
    %130 = arith.truncf %129 : vector<64x128xf32> to vector<64x128xbf16>
    %131 = vector.broadcast %3 : vector<1x128xf32> to vector<64x128xf32>
    %132 = arith.addf %125, %131 : vector<64x128xf32>
    %cst_54 = arith.constant 0.000000e+00 : f32
    %133 = vector.broadcast %cst_54 : f32 to vector<64x128xf32>
    %134 = arith.maximumf %132, %133 : vector<64x128xf32>
    %135 = arith.truncf %134 : vector<64x128xf32> to vector<64x128xbf16>
    %cst_55 = arith.constant dense<0.000000e+00> : vector<64x128xf32>
    %136 = tpu.matmul %130, %2, %cst_55 {dimension_numbers = #tpu.dot_dimension_numbers<[1], [0], [0], [1], [0, 0, 1, 1], [], []>} : vector<64x128xbf16>, vector<128x128xbf16>, vector<64x128xf32> -> vector<64x128xf32>
    %cst_56 = arith.constant dense<0.000000e+00> : vector<64x128xf32>
    %137 = tpu.matmul %135, %2, %cst_56 {dimension_numbers = #tpu.dot_dimension_numbers<[1], [0], [0], [1], [0, 0, 1, 1], [], []>} : vector<64x128xbf16>, vector<128x128xbf16>, vector<64x128xf32> -> vector<64x128xf32>
    %138 = vector.broadcast %3 : vector<1x128xf32> to vector<64x128xf32>
    %139 = arith.addf %136, %138 : vector<64x128xf32>
    %cst_57 = arith.constant 0.000000e+00 : f32
    %140 = vector.broadcast %cst_57 : f32 to vector<64x128xf32>
    %141 = arith.maximumf %139, %140 : vector<64x128xf32>
    %142 = arith.truncf %141 : vector<64x128xf32> to vector<64x128xbf16>
    %143 = vector.broadcast %3 : vector<1x128xf32> to vector<64x128xf32>
    %144 = arith.addf %137, %143 : vector<64x128xf32>
    %cst_58 = arith.constant 0.000000e+00 : f32
    %145 = vector.broadcast %cst_58 : f32 to vector<64x128xf32>
    %146 = arith.maximumf %144, %145 : vector<64x128xf32>
    %147 = arith.truncf %146 : vector<64x128xf32> to vector<64x128xbf16>
    %cst_59 = arith.constant dense<0.000000e+00> : vector<64x128xf32>
    %148 = tpu.matmul %142, %2, %cst_59 {dimension_numbers = #tpu.dot_dimension_numbers<[1], [0], [0], [1], [0, 0, 1, 1], [], []>} : vector<64x128xbf16>, vector<128x128xbf16>, vector<64x128xf32> -> vector<64x128xf32>
    %cst_60 = arith.constant dense<0.000000e+00> : vector<64x128xf32>
    %149 = tpu.matmul %147, %2, %cst_60 {dimension_numbers = #tpu.dot_dimension_numbers<[1], [0], [0], [1], [0, 0, 1, 1], [], []>} : vector<64x128xbf16>, vector<128x128xbf16>, vector<64x128xf32> -> vector<64x128xf32>
    %150 = vector.broadcast %3 : vector<1x128xf32> to vector<64x128xf32>
    %151 = arith.addf %148, %150 : vector<64x128xf32>
    %cst_61 = arith.constant 0.000000e+00 : f32
    %152 = vector.broadcast %cst_61 : f32 to vector<64x128xf32>
    %153 = arith.maximumf %151, %152 : vector<64x128xf32>
    %154 = arith.truncf %153 : vector<64x128xf32> to vector<64x128xbf16>
    %155 = vector.broadcast %3 : vector<1x128xf32> to vector<64x128xf32>
    %156 = arith.addf %149, %155 : vector<64x128xf32>
    %cst_62 = arith.constant 0.000000e+00 : f32
    %157 = vector.broadcast %cst_62 : f32 to vector<64x128xf32>
    %158 = arith.maximumf %156, %157 : vector<64x128xf32>
    %159 = arith.truncf %158 : vector<64x128xf32> to vector<64x128xbf16>
    %cst_63 = arith.constant dense<0.000000e+00> : vector<64x128xf32>
    %160 = tpu.matmul %154, %2, %cst_63 {dimension_numbers = #tpu.dot_dimension_numbers<[1], [0], [0], [1], [0, 0, 1, 1], [], []>} : vector<64x128xbf16>, vector<128x128xbf16>, vector<64x128xf32> -> vector<64x128xf32>
    %cst_64 = arith.constant dense<0.000000e+00> : vector<64x128xf32>
    %161 = tpu.matmul %159, %2, %cst_64 {dimension_numbers = #tpu.dot_dimension_numbers<[1], [0], [0], [1], [0, 0, 1, 1], [], []>} : vector<64x128xbf16>, vector<128x128xbf16>, vector<64x128xf32> -> vector<64x128xf32>
    %162 = vector.broadcast %3 : vector<1x128xf32> to vector<64x128xf32>
    %163 = arith.addf %160, %162 : vector<64x128xf32>
    %cst_65 = arith.constant 0.000000e+00 : f32
    %164 = vector.broadcast %cst_65 : f32 to vector<64x128xf32>
    %165 = arith.maximumf %163, %164 : vector<64x128xf32>
    %166 = arith.truncf %165 : vector<64x128xf32> to vector<64x128xbf16>
    %167 = vector.broadcast %3 : vector<1x128xf32> to vector<64x128xf32>
    %168 = arith.addf %161, %167 : vector<64x128xf32>
    %cst_66 = arith.constant 0.000000e+00 : f32
    %169 = vector.broadcast %cst_66 : f32 to vector<64x128xf32>
    %170 = arith.maximumf %168, %169 : vector<64x128xf32>
    %171 = arith.truncf %170 : vector<64x128xf32> to vector<64x128xbf16>
    %cst_67 = arith.constant dense<0.000000e+00> : vector<64x128xf32>
    %172 = tpu.matmul %166, %4, %cst_67 {dimension_numbers = #tpu.dot_dimension_numbers<[1], [0], [0], [1], [0, 0, 1, 1], [], []>} : vector<64x128xbf16>, vector<128x128xbf16>, vector<64x128xf32> -> vector<64x128xf32>
    %173 = vector.broadcast %5 : vector<1x128xf32> to vector<64x128xf32>
    %174 = arith.addf %172, %173 : vector<64x128xf32>
    %175 = arith.truncf %174 : vector<64x128xf32> to vector<64x128xbf16>
    %c0_68 = arith.constant 0 : index
    %c0_69 = arith.constant 0 : index
    %176 = vector.load %arg8[%c0_68, %c0_69] : memref<128x128xbf16, #tpu.memory_space<vmem>>, vector<64x128xbf16>
    tpu.vector_store %arg8[%c0_68, %c0_69], %175 {strides = array<i32>} : memref<128x128xbf16, #tpu.memory_space<vmem>>, vector<64x128xbf16>,
    %cst_70 = arith.constant dense<0.000000e+00> : vector<64x128xf32>
    %177 = tpu.matmul %171, %4, %cst_70 {dimension_numbers = #tpu.dot_dimension_numbers<[1], [0], [0], [1], [0, 0, 1, 1], [], []>} : vector<64x128xbf16>, vector<128x128xbf16>, vector<64x128xf32> -> vector<64x128xf32>
    %178 = vector.broadcast %5 : vector<1x128xf32> to vector<64x128xf32>
    %179 = arith.addf %177, %178 : vector<64x128xf32>
    %180 = arith.truncf %179 : vector<64x128xf32> to vector<64x128xbf16>
    %c64_71 = arith.constant 64 : index
    %c0_72 = arith.constant 0 : index
    %181 = vector.load %arg8[%c64_71, %c0_72] : memref<128x128xbf16, #tpu.memory_space<vmem>>, vector<64x128xbf16>
    tpu.vector_store %arg8[%c64_71, %c0_72], %180 {strides = array<i32>} : memref<128x128xbf16, #tpu.memory_space<vmem>>, vector<64x128xbf16>,
    return
  }
  func.func @transform_0(%arg0: i32) -> (i32, i32) {
    %c0_i32 = arith.constant 0 : i32
    %c0_i32_0 = arith.constant 0 : i32
    return %arg0, %c0_i32 : i32, i32
  }
  func.func @transform_1(%arg0: i32) -> (i32, i32) {
    %c0_i32 = arith.constant 0 : i32
    %c0_i32_0 = arith.constant 0 : i32
    %c0_i32_1 = arith.constant 0 : i32
    return %c0_i32, %c0_i32_0 : i32, i32
  }
  func.func @transform_2(%arg0: i32) -> (i32, i32) {
    %c0_i32 = arith.constant 0 : i32
    %c0_i32_0 = arith.constant 0 : i32
    %c0_i32_1 = arith.constant 0 : i32
    return %c0_i32, %c0_i32_0 : i32, i32
  }
  func.func @transform_3(%arg0: i32) -> (i32, i32) {
    %c0_i32 = arith.constant 0 : i32
    %c0_i32_0 = arith.constant 0 : i32
    %c0_i32_1 = arith.constant 0 : i32
    return %c0_i32, %c0_i32_0 : i32, i32
  }
  func.func @transform_4(%arg0: i32) -> (i32, i32) {
    %c0_i32 = arith.constant 0 : i32
    %c0_i32_0 = arith.constant 0 : i32
    %c0_i32_1 = arith.constant 0 : i32
    return %c0_i32, %c0_i32_0 : i32, i32
  }
  func.func @transform_5(%arg0: i32) -> (i32, i32) {
    %c0_i32 = arith.constant 0 : i32
    %c0_i32_0 = arith.constant 0 : i32
    %c0_i32_1 = arith.constant 0 : i32
    return %c0_i32, %c0_i32_0 : i32, i32
  }
  func.func @transform_6(%arg0: i32) -> (i32, i32) {
    %c0_i32 = arith.constant 0 : i32
    %c0_i32_0 = arith.constant 0 : i32
    %c0_i32_1 = arith.constant 0 : i32
    return %c0_i32, %c0_i32_0 : i32, i32
  }
  func.func @transform_7(%arg0: i32) -> (i32, i32) {
    %c0_i32 = arith.constant 0 : i32
    %c0_i32_0 = arith.constant 0 : i32
    return %arg0, %c0_i32 : i32, i32
  }
}

</mosaic_0001>

<llo_original>
// kernel: ann_forward.1
$region0: #{ann_forward.1}
  #allocation0 [shape = 'u32[]', space=smem, size = 0x4, offset = 0x4, fixed_abs, tag = 'smem constant byte address 0x4 - core index']
  #allocation1 [shape = 'u32[72,128]{1,0:T(1,128)}', space=vmem, size = 0x9000, scoped, tag = 'internal scratch']
  %s0 = inlined_call_operand.vmem [shape: bf16[256,128], index: 0, kind: input, shape index: {}]
  %s1 = inlined_call_operand.vmem [shape: bf16[128,128], index: 1, kind: input, shape index: {}]
  %s2 = inlined_call_operand.vmem [shape: f32[1,128], index: 2, kind: input, shape index: {}]
  %s3 = inlined_call_operand.vmem [shape: bf16[128,128], index: 3, kind: input, shape index: {}]
  %s4 = inlined_call_operand.vmem [shape: f32[1,128], index: 4, kind: input, shape index: {}]
  %s5 = inlined_call_operand.vmem [shape: bf16[128,128], index: 5, kind: input, shape index: {}]
  %s6 = inlined_call_operand.vmem [shape: f32[1,128], index: 6, kind: input, shape index: {}]
  %s7 = inlined_call_operand.vmem [shape: bf16[256,128], index: 7, kind: output, shape index: {}]
  %s8 = sld [smem:[#allocation0]]
  $region61: #{ann_forward.1} parent=0
    _
  %s10 = ssub.s32 1, %s8
  %s11 = scalar_select 0, %s10, %s8
  loop: start=0, step=1, limit=4
  $region2: #{ann_forward.1} parent=0 // loop_pre_header
    _
  $region3: #{ann_forward.1} parent=0 // loop_header
    %s13 = sphi 0, %s17
    %p14 = scmp.ge.s32.totalorder %s13, 4
    %s23 = sphi 0, %s25
    %s26 = sphi 0, %s23
    %s27 = sphi 0, %s26
    %s43 = sphi 0, %s27
    %s47 = sphi 0, %s47
    %s49 = sphi 0, %s47
    %s50 = sphi 0, %s49
    %s64 = sphi 0, %s50
    %s68 = sphi 0, %s68
    %s70 = sphi 0, %s68
    %s71 = sphi 0, %s70
    %s85 = sphi 0, %s71
    %s89 = sphi 0, %s89
    %s91 = sphi 0, %s89
    %s92 = sphi 0, %s91
    %s106 = sphi 0, %s92
    %s110 = sphi 0, %s110
    %s112 = sphi 0, %s110
    %s113 = sphi 0, %s112
    %s127 = sphi 0, %s113
    %s131 = sphi 0, %s131
    %s133 = sphi 0, %s131
    %s134 = sphi 0, %s133
    %s148 = sphi 0, %s134
    %s152 = sphi 0, %s152
    %s154 = sphi 0, %s152
    %s155 = sphi 0, %s154
    %s169 = sphi 0, %s155
    %s175 = sphi 0, %s177
    %s178 = sphi 0, %s175
    %s179 = sphi 0, %s178
    %s195 = sphi 0, %s179
  $region4: #{ann_forward.1} parent=0 // loop_header_branch
    %16 = sbr.rel (%p14) target = $region8
  $region5: #{ann_forward.1} parent=0 // loop_body
    %s18 = ssub.s32 %s13, 1
    %s19 = ssub.s32 %s13, 2
    %s20 = sadd.s32 %s13, 1
    %s21 = ssub.s32 %s13, %s20
    %p22 = scmp.eq.s32.totalorder %s21, 0
    %s24 = sadd.s32 %s23, 1
    %s25 = scalar_select %p22, %s23, %s24
    %p28 = pneg %p22
    %p29 = scmp.eq.s32.totalorder %s13, 1
    %p30 = por %p28, %p29
    %p31 = scmp.ne.s32.totalorder %s23, %s26
    %p32 = scmp.eq.s32.totalorder %s13, 0
    %p33 = por %p31, %p32
    %p34 = scmp.ne.s32.totalorder %s23, %s26
    %p35 = scmp.eq.s32.totalorder %s18, 1
    %p36 = por %p34, %p35
    %p37 = scmp.ne.s32.totalorder %s26, %s27
    %p38 = scmp.eq.s32.totalorder %s18, 0
    %p39 = por %p37, %p38
    %p40 = scmp.ne.s32.totalorder %s26, %s27
    %p41 = scmp.eq.s32.totalorder %s19, 1
    %p42 = por %p40, %p41
    %p44 = scmp.ne.s32.totalorder %s27, %s43
    %p45 = scmp.eq.s32.totalorder %s19, 0
    %p46 = por %p44, %p45
    %s48 = sadd.s32 %s47, 1
    %p51 = scmp.eq.s32.totalorder %s13, 1
    %p52 = scmp.ne.s32.totalorder %s47, %s49
    %p53 = scmp.eq.s32.totalorder %s13, 0
    %p54 = por %p52, %p53
    %p55 = scmp.ne.s32.totalorder %s47, %s49
    %p56 = scmp.eq.s32.totalorder %s18, 1
    %p57 = por %p55, %p56
    %p58 = scmp.ne.s32.totalorder %s49, %s50
    %p59 = scmp.eq.s32.totalorder %s18, 0
    %p60 = por %p58, %p59
    %p61 = scmp.ne.s32.totalorder %s49, %s50
    %p62 = scmp.eq.s32.totalorder %s19, 1
    %p63 = por %p61, %p62
    %p65 = scmp.ne.s32.totalorder %s50, %s64
    %p66 = scmp.eq.s32.totalorder %s19, 0
    %p67 = por %p65, %p66
    %s69 = sadd.s32 %s68, 1
    %p72 = scmp.eq.s32.totalorder %s13, 1
    %p73 = scmp.ne.s32.totalorder %s68, %s70
    %p74 = scmp.eq.s32.totalorder %s13, 0
    %p75 = por %p73, %p74
    %p76 = scmp.ne.s32.totalorder %s68, %s70
    %p77 = scmp.eq.s32.totalorder %s18, 1
    %p78 = por %p76, %p77
    %p79 = scmp.ne.s32.totalorder %s70, %s71
    %p80 = scmp.eq.s32.totalorder %s18, 0
    %p81 = por %p79, %p80
    %p82 = scmp.ne.s32.totalorder %s70, %s71
    %p83 = scmp.eq.s32.totalorder %s19, 1
    %p84 = por %p82, %p83
    %p86 = scmp.ne.s32.totalorder %s71, %s85
    %p87 = scmp.eq.s32.totalorder %s19, 0
    %p88 = por %p86, %p87
    %s90 = sadd.s32 %s89, 1
    %p93 = scmp.eq.s32.totalorder %s13, 1
    %p94 = scmp.ne.s32.totalorder %s89, %s91
    %p95 = scmp.eq.s32.totalorder %s13, 0
    %p96 = por %p94, %p95
    %p97 = scmp.ne.s32.totalorder %s89, %s91
    %p98 = scmp.eq.s32.totalorder %s18, 1
    %p99 = por %p97, %p98
    %p100 = scmp.ne.s32.totalorder %s91, %s92
    %p101 = scmp.eq.s32.totalorder %s18, 0
    %p102 = por %p100, %p101
    %p103 = scmp.ne.s32.totalorder %s91, %s92
    %p104 = scmp.eq.s32.totalorder %s19, 1
    %p105 = por %p103, %p104
    %p107 = scmp.ne.s32.totalorder %s92, %s106
    %p108 = scmp.eq.s32.totalorder %s19, 0
    %p109 = por %p107, %p108
    %s111 = sadd.s32 %s110, 1
    %p114 = scmp.eq.s32.totalorder %s13, 1
    %p115 = scmp.ne.s32.totalorder %s110, %s112
    %p116 = scmp.eq.s32.totalorder %s13, 0
    %p117 = por %p115, %p116
    %p118 = scmp.ne.s32.totalorder %s110, %s112
    %p119 = scmp.eq.s32.totalorder %s18, 1
    %p120 = por %p118, %p119
    %p121 = scmp.ne.s32.totalorder %s112, %s113
    %p122 = scmp.eq.s32.totalorder %s18, 0
    %p123 = por %p121, %p122
    %p124 = scmp.ne.s32.totalorder %s112, %s113
    %p125 = scmp.eq.s32.totalorder %s19, 1
    %p126 = por %p124, %p125
    %p128 = scmp.ne.s32.totalorder %s113, %s127
    %p129 = scmp.eq.s32.totalorder %s19, 0
    %p130 = por %p128, %p129
    %s132 = sadd.s32 %s131, 1
    %p135 = scmp.eq.s32.totalorder %s13, 1
    %p136 = scmp.ne.s32.totalorder %s131, %s133
    %p137 = scmp.eq.s32.totalorder %s13, 0
    %p138 = por %p136, %p137
    %p139 = scmp.ne.s32.totalorder %s131, %s133
    %p140 = scmp.eq.s32.totalorder %s18, 1
    %p141 = por %p139, %p140
    %p142 = scmp.ne.s32.totalorder %s133, %s134
    %p143 = scmp.eq.s32.totalorder %s18, 0
    %p144 = por %p142, %p143
    %p145 = scmp.ne.s32.totalorder %s133, %s134
    %p146 = scmp.eq.s32.totalorder %s19, 1
    %p147 = por %p145, %p146
    %p149 = scmp.ne.s32.totalorder %s134, %s148
    %p150 = scmp.eq.s32.totalorder %s19, 0
    %p151 = por %p149, %p150
    %s153 = sadd.s32 %s152, 1
    %p156 = scmp.eq.s32.totalorder %s13, 1
    %p157 = scmp.ne.s32.totalorder %s152, %s154
    %p158 = scmp.eq.s32.totalorder %s13, 0
    %p159 = por %p157, %p158
    %p160 = scmp.ne.s32.totalorder %s152, %s154
    %p161 = scmp.eq.s32.totalorder %s18, 1
    %p162 = por %p160, %p161
    %p163 = scmp.ne.s32.totalorder %s154, %s155
    %p164 = scmp.eq.s32.totalorder %s18, 0
    %p165 = por %p163, %p164
    %p166 = scmp.ne.s32.totalorder %s154, %s155
    %p167 = scmp.eq.s32.totalorder %s19, 1
    %p168 = por %p166, %p167
    %p170 = scmp.ne.s32.totalorder %s155, %s169
    %p171 = scmp.eq.s32.totalorder %s19, 0
    %p172 = por %p170, %p171
    %s173 = ssub.s32 %s13, %s20
    %p174 = scmp.eq.s32.totalorder %s173, 0
    %s176 = sadd.s32 %s175, 1
    %s177 = scalar_select %p174, %s175, %s176
    %p180 = pneg %p174
    %p181 = scmp.eq.s32.totalorder %s13, 1
    %p182 = por %p180, %p181
    %p183 = scmp.ne.s32.totalorder %s175, %s178
    %p184 = scmp.eq.s32.totalorder %s13, 0
    %p185 = por %p183, %p184
    %p186 = scmp.ne.s32.totalorder %s175, %s178
    %p187 = scmp.eq.s32.totalorder %s18, 1
    %p188 = por %p186, %p187
    %p189 = scmp.ne.s32.totalorder %s178, %s179
    %p190 = scmp.eq.s32.totalorder %s18, 0
    %p191 = por %p189, %p190
    %p192 = scmp.ne.s32.totalorder %s178, %s179
    %p193 = scmp.eq.s32.totalorder %s19, 1
    %p194 = por %p192, %p193
    %p196 = scmp.ne.s32.totalorder %s179, %s195
    %p197 = scmp.eq.s32.totalorder %s19, 0
    %p198 = por %p196, %p197
    %p199 = scmp.le.s32.totalorder 1, %s13
    %p200 = scmp.lt.s32.totalorder %s13, 3
    %p201 = pnand %p199, %p200
    %p202 = pneg %p201
    // Predicated region
    $region9: #{ann_forward.1} parent=5 // pred_check
      _
    $region10: #{ann_forward.1} parent=5 // pred_check_branch
      %204 = sbr.rel (%p201) target = $region12
    $region11: #{ann_forward.1} parent=5 // pred_region
      %s205 = ssub.s32 %s13, 1
      // Predicated region
      $region13: #{ann_forward.1} parent=11 // pred_check
        %p206 = pneg %p60
      $region14: #{ann_forward.1} parent=11 // pred_check_branch
        %208 = sbr.rel (%p206) target = $region16
      $region15: #{ann_forward.1} parent=11 // pred_region
        _
      $region16: #{ann_forward.1} parent=11 // pred_fallthru
        _
      // Predicated region
      $region17: #{ann_forward.1} parent=11 // pred_check
        %p209 = pneg %p81
      $region18: #{ann_forward.1} parent=11 // pred_check_branch
        %211 = sbr.rel (%p209) target = $region20
      $region19: #{ann_forward.1} parent=11 // pred_region
        _
      $region20: #{ann_forward.1} parent=11 // pred_fallthru
        _
      // Predicated region
      $region21: #{ann_forward.1} parent=11 // pred_check
        %p212 = pneg %p102
      $region22: #{ann_forward.1} parent=11 // pred_check_branch
        %214 = sbr.rel (%p212) target = $region24
      $region23: #{ann_forward.1} parent=11 // pred_region
        _
      $region24: #{ann_forward.1} parent=11 // pred_fallthru
        _
      // Predicated region
      $region25: #{ann_forward.1} parent=11 // pred_check
        %p215 = pneg %p123
      $region26: #{ann_forward.1} parent=11 // pred_check_branch
        %217 = sbr.rel (%p215) target = $region28
      $region27: #{ann_forward.1} parent=11 // pred_region
        _
      $region28: #{ann_forward.1} parent=11 // pred_fallthru
        _
      // Predicated region
      $region29: #{ann_forward.1} parent=11 // pred_check
        %p218 = pneg %p144
      $region30: #{ann_forward.1} parent=11 // pred_check_branch
        %220 = sbr.rel (%p218) target = $region32
      $region31: #{ann_forward.1} parent=11 // pred_region
        _
      $region32: #{ann_forward.1} parent=11 // pred_fallthru
        _
      // Predicated region
      $region33: #{ann_forward.1} parent=11 // pred_check
        %p221 = pneg %p165
      $region34: #{ann_forward.1} parent=11 // pred_check_branch
        %223 = sbr.rel (%p221) target = $region36
      $region35: #{ann_forward.1} parent=11 // pred_region
        _
      $region36: #{ann_forward.1} parent=11 // pred_fallthru
        _
    $region12: #{ann_forward.1} parent=5 // pred_fallthru
      _
    %p224 = scmp.lt.s32.totalorder %s13, 2
    // Predicated region
    $region37: #{ann_forward.1} parent=5 // pred_check
      %p225 = pneg %p224
    $region38: #{ann_forward.1} parent=5 // pred_check_branch
      %227 = sbr.rel (%p225) target = $region40
    $region39: #{ann_forward.1} parent=5 // pred_region
      // Predicated region
      $region41: #{ann_forward.1} parent=39 // pred_check
        %p228 = pneg %p33
      $region42: #{ann_forward.1} parent=39 // pred_check_branch
        %230 = sbr.rel (%p228) target = $region44
      $region43: #{ann_forward.1} parent=39 // pred_region
        %s231 = smul.u32 16, %s13
        %p232 = scmp.lt.s32.totalorder %s231, 31
        %s233 = scalar_select %p232, %s231, 31
        %s234 = smul.addr %s233, 4
        %s235 = scalar_lea.vmem %s0, %s234
        %s236 = smul.u32 16, %s13
      $region44: #{ann_forward.1} parent=39 // pred_fallthru
        _
    $region40: #{ann_forward.1} parent=5 // pred_fallthru
      _
    %p237 = scmp.le.s32.totalorder 1, %s13
    %p238 = scmp.lt.s32.totalorder %s13, 3
    %p239 = pnand %p237, %p238
    %p240 = pneg %p239
    // Predicated region
    $region45: #{ann_forward.1} parent=5 // pred_check
      _
    $region46: #{ann_forward.1} parent=5 // pred_check_branch
      %242 = sbr.rel (%p239) target = $region48
    $region47: #{ann_forward.1} parent=5 // pred_region
      %s243 = ssub.s32 %s13, 1
      %s244 = smul.u32 16, %s18
      %p245 = scmp.lt.s32.totalorder %s244, 31
      %s246 = scalar_select %p245, %s244, 31
      %s247 = smul.addr %s246, 4
      %s248 = scalar_lea.vmem %s0, %s247
      %p249 = pneg %p39
      %p250 = pneg %p36
      %p251 = pneg %p60
      %p252 = pneg %p57
      %p253 = pneg %p81
      %p254 = pneg %p78
      %p255 = pneg %p102
      %p256 = pneg %p99
      %p257 = pneg %p123
      %p258 = pneg %p120
      %p259 = pneg %p144
      %p260 = pneg %p141
      %p261 = pneg %p165
      %p262 = pneg %p162
      %p263 = pneg %p191
      %p264 = pneg %p188
      %s265 = smul.u32 16, %s18
      %p266 = scmp.lt.s32.totalorder %s265, 31
      %s267 = scalar_select %p266, %s265, 31
      %s268 = smul.addr %s267, 4
      %s269 = scalar_lea.vmem %s7, %s268
      %s270 = smul.u32 16, %s18
      %p271 = scmp.lt.s32.totalorder %s270, 31
      %s272 = scalar_select %p271, %s270, 31
      %s273 = smul.addr %s272, 4
      %s274 = scalar_lea.vmem %s0, %s273
      %s275 = smul.u32 16, %s18
      %s276 = smul.u32 16, %s18
      %p277 = scmp.lt.s32.totalorder %s276, 31
      %s278 = scalar_select %p277, %s276, 31
      %s279 = smul.addr %s278, 4
      %s280 = scalar_lea.vmem %s7, %s279
      %s281 = smul.u32 16, %s18
      %v282 = vld [vmem:[%s1] sm:$0xf]
      %v283 = vld [vmem:[%s1 + $0x4] sm:$0xf]
      %v284 = vld [vmem:[%s1 + $0x8] sm:$0xf]
      %v285 = vld [vmem:[%s1 + $0xc] sm:$0xf]
      %v286 = vld [vmem:[%s1 + $0x10] sm:$0xf]
      %v287 = vld [vmem:[%s1 + $0x14] sm:$0xf]
      %v288 = vld [vmem:[%s1 + $0x18] sm:$0xf]
      %v289 = vld [vmem:[%s1 + $0x1c] sm:$0xf]
      %v290 = vld [vmem:[%s1 + $0x20] sm:$0xf]
      %v291 = vld [vmem:[%s1 + $0x24] sm:$0xf]
      %v292 = vld [vmem:[%s1 + $0x28] sm:$0xf]
      %v293 = vld [vmem:[%s1 + $0x2c] sm:$0xf]
      %v294 = vld [vmem:[%s1 + $0x30] sm:$0xf]
      %v295 = vld [vmem:[%s1 + $0x34] sm:$0xf]
      %v296 = vld [vmem:[%s1 + $0x38] sm:$0xf]
      %v297 = vld [vmem:[%s1 + $0x3c] sm:$0xf]
      %v298 = vld [vmem:[%s2] sm:$0x1]
      %v299 = vld [vmem:[%s3] sm:$0xf]
      %v300 = vld [vmem:[%s3 + $0x4] sm:$0xf]
      %v301 = vld [vmem:[%s3 + $0x8] sm:$0xf]
      %v302 = vld [vmem:[%s3 + $0xc] sm:$0xf]
      %v303 = vld [vmem:[%s3 + $0x10] sm:$0xf]
      %v304 = vld [vmem:[%s3 + $0x14] sm:$0xf]
      %v305 = vld [vmem:[%s3 + $0x18] sm:$0xf]
      %v306 = vld [vmem:[%s3 + $0x1c] sm:$0xf]
      %v307 = vld [vmem:[%s3 + $0x20] sm:$0xf]
      %v308 = vld [vmem:[%s3 + $0x24] sm:$0xf]
      %v309 = vld [vmem:[%s3 + $0x28] sm:$0xf]
      %v310 = vld [vmem:[%s3 + $0x2c] sm:$0xf]
      %v311 = vld [vmem:[%s3 + $0x30] sm:$0xf]
      %v312 = vld [vmem:[%s3 + $0x34] sm:$0xf]
      %v313 = vld [vmem:[%s3 + $0x38] sm:$0xf]
      %v314 = vld [vmem:[%s3 + $0x3c] sm:$0xf]
      %v315 = vld [vmem:[%s4] sm:$0x1]
      %v316 = vld [vmem:[%s5] sm:$0xf]
      %v317 = vld [vmem:[%s5 + $0x4] sm:$0xf]
      %v318 = vld [vmem:[%s5 + $0x8] sm:$0xf]
      %v319 = vld [vmem:[%s5 + $0xc] sm:$0xf]
      %v320 = vld [vmem:[%s5 + $0x10] sm:$0xf]
      %v321 = vld [vmem:[%s5 + $0x14] sm:$0xf]
      %v322 = vld [vmem:[%s5 + $0x18] sm:$0xf]
      %v323 = vld [vmem:[%s5 + $0x1c] sm:$0xf]
      %v324 = vld [vmem:[%s5 + $0x20] sm:$0xf]
      %v325 = vld [vmem:[%s5 + $0x24] sm:$0xf]
      %v326 = vld [vmem:[%s5 + $0x28] sm:$0xf]
      %v327 = vld [vmem:[%s5 + $0x2c] sm:$0xf]
      %v328 = vld [vmem:[%s5 + $0x30] sm:$0xf]
      %v329 = vld [vmem:[%s5 + $0x34] sm:$0xf]
      %v330 = vld [vmem:[%s5 + $0x38] sm:$0xf]
      %v331 = vld [vmem:[%s5 + $0x3c] sm:$0xf]
      %v332 = vld [vmem:[%s6] sm:$0x1]
      %v333 = vld [vmem:[%s274] sm:$0xf]
      %v334 = vld [vmem:[%s274 + $0x4] sm:$0xf]
      %v335 = vld [vmem:[%s274 + $0x8] sm:$0xf]
      %v336 = vld [vmem:[%s274 + $0xc] sm:$0xf]
      %v337 = vld [vmem:[%s274 + $0x10] sm:$0xf]
      %v338 = vld [vmem:[%s274 + $0x14] sm:$0xf]
      %v339 = vld [vmem:[%s274 + $0x18] sm:$0xf]
      %v340 = vld [vmem:[%s274 + $0x1c] sm:$0xf]
      %v341 = vld [vmem:[%s274 + $0x20] sm:$0xf]
      %v342 = vld [vmem:[%s274 + $0x24] sm:$0xf]
      %v343 = vld [vmem:[%s274 + $0x28] sm:$0xf]
      %v344 = vld [vmem:[%s274 + $0x2c] sm:$0xf]
      %v345 = vld [vmem:[%s274 + $0x30] sm:$0xf]
      %v346 = vld [vmem:[%s274 + $0x34] sm:$0xf]
      %v347 = vld [vmem:[%s274 + $0x38] sm:$0xf]
      %v348 = vld [vmem:[%s274 + $0x3c] sm:$0xf]
      %v350 = vperm.slane %v298, 0
      %v360 = vunpack.c.l.b16 %v333
      %v361 = vunpack.c.l.b16 %v334
      %v362 = vunpack.c.l.b16 %v335
      %v363 = vunpack.c.l.b16 %v336
      %v364 = vunpack.c.l.b16 %v337
      %v365 = vunpack.c.l.b16 %v338
      %v366 = vunpack.c.l.b16 %v339
      %v367 = vunpack.c.l.b16 %v340
      %v368 = vpack.c.b16 %v361, %v360
      %v369 = vpack.c.b16 %v363, %v362
      %v370 = vpack.c.b16 %v365, %v364
      %v371 = vpack.c.b16 %v367, %v366
      %v392 = vunpack.c.l.b16 %v282
      %v393 = vunpack.c.l.b16 %v283
      %v394 = vunpack.c.l.b16 %v284
      %v395 = vunpack.c.l.b16 %v285
      %v396 = vunpack.c.l.b16 %v286
      %v397 = vunpack.c.l.b16 %v287
      %v398 = vunpack.c.l.b16 %v288
      %v399 = vunpack.c.l.b16 %v289
      %v400 = vunpack.c.l.b16 %v290
      %v401 = vunpack.c.l.b16 %v291
      %v402 = vunpack.c.l.b16 %v292
      %v403 = vunpack.c.l.b16 %v293
      %v404 = vunpack.c.l.b16 %v294
      %v405 = vunpack.c.l.b16 %v295
      %v406 = vunpack.c.l.b16 %v296
      %v407 = vunpack.c.l.b16 %v297
      %v408 = vpack.c.b16 %v393, %v392
      %v409 = vpack.c.b16 %v395, %v394
      %v410 = vpack.c.b16 %v397, %v396
      %v411 = vpack.c.b16 %v399, %v398
      %v412 = vpack.c.b16 %v401, %v400
      %v413 = vpack.c.b16 %v403, %v402
      %v414 = vpack.c.b16 %v405, %v404
      %v415 = vpack.c.b16 %v407, %v406
      %424 = vmatpush.bf16.msra.mxu0 %v415
      %425 = vmatpush.bf16.msra.mxu0 %v414
      %426 = vmatpush.bf16.msra.mxu0 %v413
      %427 = vmatpush.bf16.msra.mxu0 %v412
      %428 = vmatpush.bf16.msra.mxu0 %v411
      %429 = vmatpush.bf16.msra.mxu0 %v410
      %430 = vmatpush.bf16.msra.mxu0 %v409
      %431 = vmatpush.bf16.msra.mxu0 %v408
      %432 = vmatmul.bf16.gmra.mxu0 %v368
      %v433 = vpop.f32.mrf.mxu0
      %v434 = vadd.f32 %v350, %v433
      %v435 = vpop.f32.mrf.mxu0
      %v436 = vadd.f32 %v350, %v435
      %437 = vmatmul.bf16.gmra.mxu0 %v369
      %v438 = vpop.f32.mrf.mxu0
      %v439 = vadd.f32 %v350, %v438
      %v440 = vpop.f32.mrf.mxu0
      %v441 = vadd.f32 %v350, %v440
      %442 = vmatmul.bf16.gmra.mxu0 %v370
      %v443 = vpop.f32.mrf.mxu0
      %v444 = vadd.f32 %v350, %v443
      %v445 = vpop.f32.mrf.mxu0
      %v446 = vadd.f32 %v350, %v445
      %447 = vmatmul.bf16.gmra.mxu0 %v371
      %v448 = vpop.f32.mrf.mxu0
      %v449 = vadd.f32 %v350, %v448
      %v450 = vpop.f32.mrf.mxu0
      %v451 = vadd.f32 %v350, %v450
      %452 = vdwg.mxu0
      %v453 = vpack.c.bf16 %v436, %v434
      %v454 = vpack.c.bf16 %v441, %v439
      %v455 = vpack.c.bf16 %v446, %v444
      %v456 = vpack.c.bf16 %v451, %v449
      %v465 = vunpack.c.l.b16 %v341
      %v466 = vunpack.c.l.b16 %v342
      %v467 = vunpack.c.l.b16 %v343
      %v468 = vunpack.c.l.b16 %v344
      %v469 = vunpack.c.l.b16 %v345
      %v470 = vunpack.c.l.b16 %v346
      %v471 = vunpack.c.l.b16 %v347
      %v472 = vunpack.c.l.b16 %v348
      %v473 = vpack.c.b16 %v466, %v465
      %v474 = vpack.c.b16 %v468, %v467
      %v475 = vpack.c.b16 %v470, %v469
      %v476 = vpack.c.b16 %v472, %v471
      %481 = vmatpush.bf16.msra.mxu0 %v415
      %482 = vmatpush.bf16.msra.mxu0 %v414
      %483 = vmatpush.bf16.msra.mxu0 %v413
      %484 = vmatpush.bf16.msra.mxu0 %v412
      %485 = vmatpush.bf16.msra.mxu0 %v411
      %486 = vmatpush.bf16.msra.mxu0 %v410
      %487 = vmatpush.bf16.msra.mxu0 %v409
      %488 = vmatpush.bf16.msra.mxu0 %v408
      %489 = vmatmul.bf16.gmra.mxu0 %v473
      %v490 = vpop.f32.mrf.mxu0
      %v491 = vadd.f32 %v350, %v490
      %v492 = vpop.f32.mrf.mxu0
      %v493 = vadd.f32 %v350, %v492
      %494 = vmatmul.bf16.gmra.mxu0 %v474
      %v495 = vpop.f32.mrf.mxu0
      %v496 = vadd.f32 %v350, %v495
      %v497 = vpop.f32.mrf.mxu0
      %v498 = vadd.f32 %v350, %v497
      %499 = vmatmul.bf16.gmra.mxu0 %v475
      %v500 = vpop.f32.mrf.mxu0
      %v501 = vadd.f32 %v350, %v500
      %v502 = vpop.f32.mrf.mxu0
      %v503 = vadd.f32 %v350, %v502
      %504 = vmatmul.bf16.gmra.mxu0 %v476
      %v505 = vpop.f32.mrf.mxu0
      %v506 = vadd.f32 %v350, %v505
      %v507 = vpop.f32.mrf.mxu0
      %v508 = vadd.f32 %v350, %v507
      %509 = vdwg.mxu0
      %v510 = vpack.c.bf16 %v493, %v491
      %v511 = vpack.c.bf16 %v498, %v496
      %v512 = vpack.c.bf16 %v503, %v501
      %v513 = vpack.c.bf16 %v508, %v506
      %v515 = vperm.slane %v315, 0
      %v533 = vunpack.c.l.b16 %v299
      %v534 = vunpack.c.l.b16 %v300
      %v535 = vunpack.c.l.b16 %v301
      %v536 = vunpack.c.l.b16 %v302
      %v537 = vunpack.c.l.b16 %v303
      %v538 = vunpack.c.l.b16 %v304
      %v539 = vunpack.c.l.b16 %v305
      %v540 = vunpack.c.l.b16 %v306
      %v541 = vunpack.c.l.b16 %v307
      %v542 = vunpack.c.l.b16 %v308
      %v543 = vunpack.c.l.b16 %v309
      %v544 = vunpack.c.l.b16 %v310
      %v545 = vunpack.c.l.b16 %v311
      %v546 = vunpack.c.l.b16 %v312
      %v547 = vunpack.c.l.b16 %v313
      %v548 = vunpack.c.l.b16 %v314
      %v549 = vpack.c.b16 %v534, %v533
      %v550 = vpack.c.b16 %v536, %v535
      %v551 = vpack.c.b16 %v538, %v537
      %v552 = vpack.c.b16 %v540, %v539
      %v553 = vpack.c.b16 %v542, %v541
      %v554 = vpack.c.b16 %v544, %v543
      %v555 = vpack.c.b16 %v546, %v545
      %v556 = vpack.c.b16 %v548, %v547
      %565 = vmatpush.bf16.msra.mxu0 %v556
      %566 = vmatpush.bf16.msra.mxu0 %v555
      %567 = vmatpush.bf16.msra.mxu0 %v554
      %568 = vmatpush.bf16.msra.mxu0 %v553
      %569 = vmatpush.bf16.msra.mxu0 %v552
      %570 = vmatpush.bf16.msra.mxu0 %v551
      %571 = vmatpush.bf16.msra.mxu0 %v550
      %572 = vmatpush.bf16.msra.mxu0 %v549
      %573 = vmatmul.bf16.gmra.mxu0 %v453
      %v574 = vpop.f32.mrf.mxu0
      %v575 = vadd.f32 %v515, %v574
      %v576 = vpop.f32.mrf.mxu0
      %v577 = vadd.f32 %v515, %v576
      %578 = vmatmul.bf16.gmra.mxu0 %v454
      %v579 = vpop.f32.mrf.mxu0
      %v580 = vadd.f32 %v515, %v579
      %v581 = vpop.f32.mrf.mxu0
      %v582 = vadd.f32 %v515, %v581
      %583 = vmatmul.bf16.gmra.mxu0 %v455
      %v584 = vpop.f32.mrf.mxu0
      %v585 = vadd.f32 %v515, %v584
      %v586 = vpop.f32.mrf.mxu0
      %v587 = vadd.f32 %v515, %v586
      %588 = vmatmul.bf16.gmra.mxu0 %v456
      %v589 = vpop.f32.mrf.mxu0
      %v590 = vadd.f32 %v515, %v589
      %v591 = vpop.f32.mrf.mxu0
      %v592 = vadd.f32 %v515, %v591
      %593 = vdwg.mxu0
      %v594 = vmax.f32 %v575, 0.0
      %v595 = vmax.f32 %v577, 0.0
      %v596 = vmax.f32 %v580, 0.0
      %v597 = vmax.f32 %v582, 0.0
      %v598 = vmax.f32 %v585, 0.0
      %v599 = vmax.f32 %v587, 0.0
      %v600 = vmax.f32 %v590, 0.0
      %v601 = vmax.f32 %v592, 0.0
      %v602 = vpack.c.bf16 %v595, %v594
      %v603 = vpack.c.bf16 %v597, %v596
      %v604 = vpack.c.bf16 %v599, %v598
      %v605 = vpack.c.bf16 %v601, %v600
      %606 = vmatpush.bf16.msra.mxu0 %v556
      %607 = vmatpush.bf16.msra.mxu0 %v555
      %608 = vmatpush.bf16.msra.mxu0 %v554
      %609 = vmatpush.bf16.msra.mxu0 %v553
      %610 = vmatpush.bf16.msra.mxu0 %v552
      %611 = vmatpush.bf16.msra.mxu0 %v551
      %612 = vmatpush.bf16.msra.mxu0 %v550
      %613 = vmatpush.bf16.msra.mxu0 %v549
      %614 = vmatmul.bf16.gmra.mxu0 %v510
      %v615 = vpop.f32.mrf.mxu0
      %v616 = vadd.f32 %v515, %v615
      %v617 = vpop.f32.mrf.mxu0
      %v618 = vadd.f32 %v515, %v617
      %619 = vmatmul.bf16.gmra.mxu0 %v511
      %v620 = vpop.f32.mrf.mxu0
      %v621 = vadd.f32 %v515, %v620
      %v622 = vpop.f32.mrf.mxu0
      %v623 = vadd.f32 %v515, %v622
      %624 = vmatmul.bf16.gmra.mxu0 %v512
      %v625 = vpop.f32.mrf.mxu0
      %v626 = vadd.f32 %v515, %v625
      %v627 = vpop.f32.mrf.mxu0
      %v628 = vadd.f32 %v515, %v627
      %629 = vmatmul.bf16.gmra.mxu0 %v513
      %v630 = vpop.f32.mrf.mxu0
      %v631 = vadd.f32 %v515, %v630
      %v632 = vpop.f32.mrf.mxu0
      %v633 = vadd.f32 %v515, %v632
      %634 = vdwg.mxu0
      %v635 = vmax.f32 %v616, 0.0
      %v636 = vmax.f32 %v618, 0.0
      %v637 = vmax.f32 %v621, 0.0
      %v638 = vmax.f32 %v623, 0.0
      %v639 = vmax.f32 %v626, 0.0
      %v640 = vmax.f32 %v628, 0.0
      %v641 = vmax.f32 %v631, 0.0
      %v642 = vmax.f32 %v633, 0.0
      %v643 = vpack.c.bf16 %v636, %v635
      %v644 = vpack.c.bf16 %v638, %v637
      %v645 = vpack.c.bf16 %v640, %v639
      %v646 = vpack.c.bf16 %v642, %v641
      %647 = vmatpush.bf16.msra.mxu0 %v556
      %648 = vmatpush.bf16.msra.mxu0 %v555
      %649 = vmatpush.bf16.msra.mxu0 %v554
      %650 = vmatpush.bf16.msra.mxu0 %v553
      %651 = vmatpush.bf16.msra.mxu0 %v552
      %652 = vmatpush.bf16.msra.mxu0 %v551
      %653 = vmatpush.bf16.msra.mxu0 %v550
      %654 = vmatpush.bf16.msra.mxu0 %v549
      %655 = vmatmul.bf16.gmra.mxu0 %v602
      %v656 = vpop.f32.mrf.mxu0
      %v657 = vadd.f32 %v515, %v656
      %v658 = vpop.f32.mrf.mxu0
      %v659 = vadd.f32 %v515, %v658
      %660 = vmatmul.bf16.gmra.mxu0 %v603
      %v661 = vpop.f32.mrf.mxu0
      %v662 = vadd.f32 %v515, %v661
      %v663 = vpop.f32.mrf.mxu0
      %v664 = vadd.f32 %v515, %v663
      %665 = vmatmul.bf16.gmra.mxu0 %v604
      %v666 = vpop.f32.mrf.mxu0
      %v667 = vadd.f32 %v515, %v666
      %v668 = vpop.f32.mrf.mxu0
      %v669 = vadd.f32 %v515, %v668
      %670 = vmatmul.bf16.gmra.mxu0 %v605
      %v671 = vpop.f32.mrf.mxu0
      %v672 = vadd.f32 %v515, %v671
      %v673 = vpop.f32.mrf.mxu0
      %v674 = vadd.f32 %v515, %v673
      %675 = vdwg.mxu0
      %v676 = vmax.f32 %v657, 0.0
      %v677 = vmax.f32 %v659, 0.0
      %v678 = vmax.f32 %v662, 0.0
      %v679 = vmax.f32 %v664, 0.0
      %v680 = vmax.f32 %v667, 0.0
      %v681 = vmax.f32 %v669, 0.0
      %v682 = vmax.f32 %v672, 0.0
      %v683 = vmax.f32 %v674, 0.0
      %v684 = vpack.c.bf16 %v677, %v676
      %v685 = vpack.c.bf16 %v679, %v678
      %v686 = vpack.c.bf16 %v681, %v680
      %v687 = vpack.c.bf16 %v683, %v682
      %688 = vmatpush.bf16.msra.mxu0 %v556
      %689 = vmatpush.bf16.msra.mxu0 %v555
      %690 = vmatpush.bf16.msra.mxu0 %v554
      %691 = vmatpush.bf16.msra.mxu0 %v553
      %692 = vmatpush.bf16.msra.mxu0 %v552
      %693 = vmatpush.bf16.msra.mxu0 %v551
      %694 = vmatpush.bf16.msra.mxu0 %v550
      %695 = vmatpush.bf16.msra.mxu0 %v549
      %696 = vmatmul.bf16.gmra.mxu0 %v643
      %v697 = vpop.f32.mrf.mxu0
      %v698 = vadd.f32 %v515, %v697
      %v699 = vpop.f32.mrf.mxu0
      %v700 = vadd.f32 %v515, %v699
      %701 = vmatmul.bf16.gmra.mxu0 %v644
      %v702 = vpop.f32.mrf.mxu0
      %v703 = vadd.f32 %v515, %v702
      %v704 = vpop.f32.mrf.mxu0
      %v705 = vadd.f32 %v515, %v704
      %706 = vmatmul.bf16.gmra.mxu0 %v645
      %v707 = vpop.f32.mrf.mxu0
      %v708 = vadd.f32 %v515, %v707
      %v709 = vpop.f32.mrf.mxu0
      %v710 = vadd.f32 %v515, %v709
      %711 = vmatmul.bf16.gmra.mxu0 %v646
      %v712 = vpop.f32.mrf.mxu0
      %v713 = vadd.f32 %v515, %v712
      %v714 = vpop.f32.mrf.mxu0
      %v715 = vadd.f32 %v515, %v714
      %716 = vdwg.mxu0
      %v717 = vmax.f32 %v698, 0.0
      %v718 = vmax.f32 %v700, 0.0
      %v719 = vmax.f32 %v703, 0.0
      %v720 = vmax.f32 %v705, 0.0
      %v721 = vmax.f32 %v708, 0.0
      %v722 = vmax.f32 %v710, 0.0
      %v723 = vmax.f32 %v713, 0.0
      %v724 = vmax.f32 %v715, 0.0
      %v725 = vpack.c.bf16 %v718, %v717
      %v726 = vpack.c.bf16 %v720, %v719
      %v727 = vpack.c.bf16 %v722, %v721
      %v728 = vpack.c.bf16 %v724, %v723
      %729 = vmatpush.bf16.msra.mxu0 %v556
      %730 = vmatpush.bf16.msra.mxu0 %v555
      %731 = vmatpush.bf16.msra.mxu0 %v554
      %732 = vmatpush.bf16.msra.mxu0 %v553
      %733 = vmatpush.bf16.msra.mxu0 %v552
      %734 = vmatpush.bf16.msra.mxu0 %v551
      %735 = vmatpush.bf16.msra.mxu0 %v550
      %736 = vmatpush.bf16.msra.mxu0 %v549
      %737 = vmatmul.bf16.gmra.mxu0 %v684
      %v738 = vpop.f32.mrf.mxu0
      %v739 = vadd.f32 %v515, %v738
      %v740 = vpop.f32.mrf.mxu0
      %v741 = vadd.f32 %v515, %v740
      %742 = vmatmul.bf16.gmra.mxu0 %v685
      %v743 = vpop.f32.mrf.mxu0
      %v744 = vadd.f32 %v515, %v743
      %v745 = vpop.f32.mrf.mxu0
      %v746 = vadd.f32 %v515, %v745
      %747 = vmatmul.bf16.gmra.mxu0 %v686
      %v748 = vpop.f32.mrf.mxu0
      %v749 = vadd.f32 %v515, %v748
      %v750 = vpop.f32.mrf.mxu0
      %v751 = vadd.f32 %v515, %v750
      %752 = vmatmul.bf16.gmra.mxu0 %v687
      %v753 = vpop.f32.mrf.mxu0
      %v754 = vadd.f32 %v515, %v753
      %v755 = vpop.f32.mrf.mxu0
      %v756 = vadd.f32 %v515, %v755
      %757 = vdwg.mxu0
      %v758 = vmax.f32 %v739, 0.0
      %v759 = vmax.f32 %v741, 0.0
      %v760 = vmax.f32 %v744, 0.0
      %v761 = vmax.f32 %v746, 0.0
      %v762 = vmax.f32 %v749, 0.0
      %v763 = vmax.f32 %v751, 0.0
      %v764 = vmax.f32 %v754, 0.0
      %v765 = vmax.f32 %v756, 0.0
      %v766 = vpack.c.bf16 %v759, %v758
      %v767 = vpack.c.bf16 %v761, %v760
      %v768 = vpack.c.bf16 %v763, %v762
      %v769 = vpack.c.bf16 %v765, %v764
      %770 = vmatpush.bf16.msra.mxu0 %v556
      %771 = vmatpush.bf16.msra.mxu0 %v555
      %772 = vmatpush.bf16.msra.mxu0 %v554
      %773 = vmatpush.bf16.msra.mxu0 %v553
      %774 = vmatpush.bf16.msra.mxu0 %v552
      %775 = vmatpush.bf16.msra.mxu0 %v551
      %776 = vmatpush.bf16.msra.mxu0 %v550
      %777 = vmatpush.bf16.msra.mxu0 %v549
      %778 = vmatmul.bf16.gmra.mxu0 %v725
      %v779 = vpop.f32.mrf.mxu0
      %v780 = vadd.f32 %v515, %v779
      %v781 = vpop.f32.mrf.mxu0
      %v782 = vadd.f32 %v515, %v781
      %783 = vmatmul.bf16.gmra.mxu0 %v726
      %v784 = vpop.f32.mrf.mxu0
      %v785 = vadd.f32 %v515, %v784
      %v786 = vpop.f32.mrf.mxu0
      %v787 = vadd.f32 %v515, %v786
      %788 = vmatmul.bf16.gmra.mxu0 %v727
      %v789 = vpop.f32.mrf.mxu0
      %v790 = vadd.f32 %v515, %v789
      %v791 = vpop.f32.mrf.mxu0
      %v792 = vadd.f32 %v515, %v791
      %793 = vmatmul.bf16.gmra.mxu0 %v728
      %v794 = vpop.f32.mrf.mxu0
      %v795 = vadd.f32 %v515, %v794
      %v796 = vpop.f32.mrf.mxu0
      %v797 = vadd.f32 %v515, %v796
      %798 = vdwg.mxu0
      %v799 = vmax.f32 %v780, 0.0
      %v800 = vmax.f32 %v782, 0.0
      %v801 = vmax.f32 %v785, 0.0
      %v802 = vmax.f32 %v787, 0.0
      %v803 = vmax.f32 %v790, 0.0
      %v804 = vmax.f32 %v792, 0.0
      %v805 = vmax.f32 %v795, 0.0
      %v806 = vmax.f32 %v797, 0.0
      %v807 = vpack.c.bf16 %v800, %v799
      %v808 = vpack.c.bf16 %v802, %v801
      %v809 = vpack.c.bf16 %v804, %v803
      %v810 = vpack.c.bf16 %v806, %v805
      %811 = vmatpush.bf16.msra.mxu0 %v556
      %812 = vmatpush.bf16.msra.mxu0 %v555
      %813 = vmatpush.bf16.msra.mxu0 %v554
      %814 = vmatpush.bf16.msra.mxu0 %v553
      %815 = vmatpush.bf16.msra.mxu0 %v552
      %816 = vmatpush.bf16.msra.mxu0 %v551
      %817 = vmatpush.bf16.msra.mxu0 %v550
      %818 = vmatpush.bf16.msra.mxu0 %v549
      %819 = vmatmul.bf16.gmra.mxu0 %v766
      %v820 = vpop.f32.mrf.mxu0
      %v821 = vadd.f32 %v515, %v820
      %v822 = vpop.f32.mrf.mxu0
      %v823 = vadd.f32 %v515, %v822
      %824 = vmatmul.bf16.gmra.mxu0 %v767
      %v825 = vpop.f32.mrf.mxu0
      %v826 = vadd.f32 %v515, %v825
      %v827 = vpop.f32.mrf.mxu0
      %v828 = vadd.f32 %v515, %v827
      %829 = vmatmul.bf16.gmra.mxu0 %v768
      %v830 = vpop.f32.mrf.mxu0
      %v831 = vadd.f32 %v515, %v830
      %v832 = vpop.f32.mrf.mxu0
      %v833 = vadd.f32 %v515, %v832
      %834 = vmatmul.bf16.gmra.mxu0 %v769
      %v835 = vpop.f32.mrf.mxu0
      %v836 = vadd.f32 %v515, %v835
      %v837 = vpop.f32.mrf.mxu0
      %v838 = vadd.f32 %v515, %v837
      %839 = vdwg.mxu0
      %v840 = vmax.f32 %v821, 0.0
      %v841 = vmax.f32 %v823, 0.0
      %v842 = vmax.f32 %v826, 0.0
      %v843 = vmax.f32 %v828, 0.0
      %v844 = vmax.f32 %v831, 0.0
      %v845 = vmax.f32 %v833, 0.0
      %v846 = vmax.f32 %v836, 0.0
      %v847 = vmax.f32 %v838, 0.0
      %v848 = vpack.c.bf16 %v841, %v840
      %v849 = vpack.c.bf16 %v843, %v842
      %v850 = vpack.c.bf16 %v845, %v844
      %v851 = vpack.c.bf16 %v847, %v846
      %852 = vmatpush.bf16.msra.mxu0 %v556
      %853 = vmatpush.bf16.msra.mxu0 %v555
      %854 = vmatpush.bf16.msra.mxu0 %v554
      %855 = vmatpush.bf16.msra.mxu0 %v553
      %856 = vmatpush.bf16.msra.mxu0 %v552
      %857 = vmatpush.bf16.msra.mxu0 %v551
      %858 = vmatpush.bf16.msra.mxu0 %v550
      %859 = vmatpush.bf16.msra.mxu0 %v549
      %860 = vmatmul.bf16.gmra.mxu0 %v807
      %v861 = vpop.f32.mrf.mxu0
      %v862 = vadd.f32 %v515, %v861
      %v863 = vpop.f32.mrf.mxu0
      %v864 = vadd.f32 %v515, %v863
      %865 = vmatmul.bf16.gmra.mxu0 %v808
      %v866 = vpop.f32.mrf.mxu0
      %v867 = vadd.f32 %v515, %v866
      %v868 = vpop.f32.mrf.mxu0
      %v869 = vadd.f32 %v515, %v868
      %870 = vmatmul.bf16.gmra.mxu0 %v809
      %v871 = vpop.f32.mrf.mxu0
      %v872 = vadd.f32 %v515, %v871
      %v873 = vpop.f32.mrf.mxu0
      %v874 = vadd.f32 %v515, %v873
      %875 = vmatmul.bf16.gmra.mxu0 %v810
      %v876 = vpop.f32.mrf.mxu0
      %v877 = vadd.f32 %v515, %v876
      %v878 = vpop.f32.mrf.mxu0
      %v879 = vadd.f32 %v515, %v878
      %880 = vdwg.mxu0
      %v881 = vmax.f32 %v862, 0.0
      %v882 = vmax.f32 %v864, 0.0
      %v883 = vmax.f32 %v867, 0.0
      %v884 = vmax.f32 %v869, 0.0
      %v885 = vmax.f32 %v872, 0.0
      %v886 = vmax.f32 %v874, 0.0
      %v887 = vmax.f32 %v877, 0.0
      %v888 = vmax.f32 %v879, 0.0
      %v889 = vpack.c.bf16 %v882, %v881
      %v890 = vpack.c.bf16 %v884, %v883
      %v891 = vpack.c.bf16 %v886, %v885
      %v892 = vpack.c.bf16 %v888, %v887
      %893 = vmatpush.bf16.msra.mxu0 %v556
      %894 = vmatpush.bf16.msra.mxu0 %v555
      %895 = vmatpush.bf16.msra.mxu0 %v554
      %896 = vmatpush.bf16.msra.mxu0 %v553
      %897 = vmatpush.bf16.msra.mxu0 %v552
      %898 = vmatpush.bf16.msra.mxu0 %v551
      %899 = vmatpush.bf16.msra.mxu0 %v550
      %900 = vmatpush.bf16.msra.mxu0 %v549
      %901 = vmatmul.bf16.gmra.mxu0 %v848
      %v902 = vpop.f32.mrf.mxu0
      %v903 = vadd.f32 %v515, %v902
      %v904 = vpop.f32.mrf.mxu0
      %v905 = vadd.f32 %v515, %v904
      %906 = vmatmul.bf16.gmra.mxu0 %v849
      %v907 = vpop.f32.mrf.mxu0
      %v908 = vadd.f32 %v515, %v907
      %v909 = vpop.f32.mrf.mxu0
      %v910 = vadd.f32 %v515, %v909
      %911 = vmatmul.bf16.gmra.mxu0 %v850
      %v912 = vpop.f32.mrf.mxu0
      %v913 = vadd.f32 %v515, %v912
      %v914 = vpop.f32.mrf.mxu0
      %v915 = vadd.f32 %v515, %v914
      %916 = vmatmul.bf16.gmra.mxu0 %v851
      %v917 = vpop.f32.mrf.mxu0
      %v918 = vadd.f32 %v515, %v917
      %v919 = vpop.f32.mrf.mxu0
      %v920 = vadd.f32 %v515, %v919
      %921 = vdwg.mxu0
      %v922 = vmax.f32 %v903, 0.0
      %v923 = vmax.f32 %v905, 0.0
      %v924 = vmax.f32 %v908, 0.0
      %v925 = vmax.f32 %v910, 0.0
      %v926 = vmax.f32 %v913, 0.0
      %v927 = vmax.f32 %v915, 0.0
      %v928 = vmax.f32 %v918, 0.0
      %v929 = vmax.f32 %v920, 0.0
      %v930 = vpack.c.bf16 %v923, %v922
      %v931 = vpack.c.bf16 %v925, %v924
      %v932 = vpack.c.bf16 %v927, %v926
      %v933 = vpack.c.bf16 %v929, %v928
      %934 = vmatpush.bf16.msra.mxu0 %v556
      %935 = vmatpush.bf16.msra.mxu0 %v555
      %936 = vmatpush.bf16.msra.mxu0 %v554
      %937 = vmatpush.bf16.msra.mxu0 %v553
      %938 = vmatpush.bf16.msra.mxu0 %v552
      %939 = vmatpush.bf16.msra.mxu0 %v551
      %940 = vmatpush.bf16.msra.mxu0 %v550
      %941 = vmatpush.bf16.msra.mxu0 %v549
      %942 = vmatmul.bf16.gmra.mxu0 %v889
      %v943 = vpop.f32.mrf.mxu0
      %v944 = vadd.f32 %v515, %v943
      %v945 = vpop.f32.mrf.mxu0
      %v946 = vadd.f32 %v515, %v945
      %947 = vmatmul.bf16.gmra.mxu0 %v890
      %v948 = vpop.f32.mrf.mxu0
      %v949 = vadd.f32 %v515, %v948
      %v950 = vpop.f32.mrf.mxu0
      %v951 = vadd.f32 %v515, %v950
      %952 = vmatmul.bf16.gmra.mxu0 %v891
      %v953 = vpop.f32.mrf.mxu0
      %v954 = vadd.f32 %v515, %v953
      %v955 = vpop.f32.mrf.mxu0
      %v956 = vadd.f32 %v515, %v955
      %957 = vmatmul.bf16.gmra.mxu0 %v892
      %v958 = vpop.f32.mrf.mxu0
      %v959 = vadd.f32 %v515, %v958
      %v960 = vpop.f32.mrf.mxu0
      %v961 = vadd.f32 %v515, %v960
      %962 = vdwg.mxu0
      %v963 = vmax.f32 %v944, 0.0
      %v964 = vmax.f32 %v946, 0.0
      %v965 = vmax.f32 %v949, 0.0
      %v966 = vmax.f32 %v951, 0.0
      %v967 = vmax.f32 %v954, 0.0
      %v968 = vmax.f32 %v956, 0.0
      %v969 = vmax.f32 %v959, 0.0
      %v970 = vmax.f32 %v961, 0.0
      %v971 = vpack.c.bf16 %v964, %v963
      %v972 = vpack.c.bf16 %v966, %v965
      %v973 = vpack.c.bf16 %v968, %v967
      %v974 = vpack.c.bf16 %v970, %v969
      %975 = vmatpush.bf16.msra.mxu0 %v556
      %976 = vmatpush.bf16.msra.mxu0 %v555
      %977 = vmatpush.bf16.msra.mxu0 %v554
      %978 = vmatpush.bf16.msra.mxu0 %v553
      %979 = vmatpush.bf16.msra.mxu0 %v552
      %980 = vmatpush.bf16.msra.mxu0 %v551
      %981 = vmatpush.bf16.msra.mxu0 %v550
      %982 = vmatpush.bf16.msra.mxu0 %v549
      %983 = vmatmul.bf16.gmra.mxu0 %v930
      %v984 = vpop.f32.mrf.mxu0
      %v985 = vadd.f32 %v515, %v984
      %v986 = vpop.f32.mrf.mxu0
      %v987 = vadd.f32 %v515, %v986
      %988 = vmatmul.bf16.gmra.mxu0 %v931
      %v989 = vpop.f32.mrf.mxu0
      %v990 = vadd.f32 %v515, %v989
      %v991 = vpop.f32.mrf.mxu0
      %v992 = vadd.f32 %v515, %v991
      %993 = vmatmul.bf16.gmra.mxu0 %v932
      %v994 = vpop.f32.mrf.mxu0
      %v995 = vadd.f32 %v515, %v994
      %v996 = vpop.f32.mrf.mxu0
      %v997 = vadd.f32 %v515, %v996
      %998 = vmatmul.bf16.gmra.mxu0 %v933
      %v999 = vpop.f32.mrf.mxu0
      %v1000 = vadd.f32 %v515, %v999
      %v1001 = vpop.f32.mrf.mxu0
      %v1002 = vadd.f32 %v515, %v1001
      %1003 = vdwg.mxu0
      %v1004 = vmax.f32 %v985, 0.0
      %v1005 = vmax.f32 %v987, 0.0
      %v1006 = vmax.f32 %v990, 0.0
      %v1007 = vmax.f32 %v992, 0.0
      %v1008 = vmax.f32 %v995, 0.0
      %v1009 = vmax.f32 %v997, 0.0
      %v1010 = vmax.f32 %v1000, 0.0
      %v1011 = vmax.f32 %v1002, 0.0
      %v1012 = vpack.c.bf16 %v1005, %v1004
      %v1013 = vpack.c.bf16 %v1007, %v1006
      %v1014 = vpack.c.bf16 %v1009, %v1008
      %v1015 = vpack.c.bf16 %v1011, %v1010
      %1016 = vmatpush.bf16.msra.mxu0 %v556
      %1017 = vmatpush.bf16.msra.mxu0 %v555
      %1018 = vmatpush.bf16.msra.mxu0 %v554
      %1019 = vmatpush.bf16.msra.mxu0 %v553
      %1020 = vmatpush.bf16.msra.mxu0 %v552
      %1021 = vmatpush.bf16.msra.mxu0 %v551
      %1022 = vmatpush.bf16.msra.mxu0 %v550
      %1023 = vmatpush.bf16.msra.mxu0 %v549
      %1024 = vmatmul.bf16.gmra.mxu0 %v971
      %v1025 = vpop.f32.mrf.mxu0
      %v1026 = vadd.f32 %v515, %v1025
      %v1027 = vpop.f32.mrf.mxu0
      %v1028 = vadd.f32 %v515, %v1027
      %1029 = vmatmul.bf16.gmra.mxu0 %v972
      %v1030 = vpop.f32.mrf.mxu0
      %v1031 = vadd.f32 %v515, %v1030
      %v1032 = vpop.f32.mrf.mxu0
      %v1033 = vadd.f32 %v515, %v1032
      %1034 = vmatmul.bf16.gmra.mxu0 %v973
      %v1035 = vpop.f32.mrf.mxu0
      %v1036 = vadd.f32 %v515, %v1035
      %v1037 = vpop.f32.mrf.mxu0
      %v1038 = vadd.f32 %v515, %v1037
      %1039 = vmatmul.bf16.gmra.mxu0 %v974
      %v1040 = vpop.f32.mrf.mxu0
      %v1041 = vadd.f32 %v515, %v1040
      %v1042 = vpop.f32.mrf.mxu0
      %v1043 = vadd.f32 %v515, %v1042
      %1044 = vdwg.mxu0
      %v1045 = vmax.f32 %v1026, 0.0
      %v1046 = vmax.f32 %v1028, 0.0
      %v1047 = vmax.f32 %v1031, 0.0
      %v1048 = vmax.f32 %v1033, 0.0
      %v1049 = vmax.f32 %v1036, 0.0
      %v1050 = vmax.f32 %v1038, 0.0
      %v1051 = vmax.f32 %v1041, 0.0
      %v1052 = vmax.f32 %v1043, 0.0
      %v1053 = vpack.c.bf16 %v1046, %v1045
      %v1054 = vpack.c.bf16 %v1048, %v1047
      %v1055 = vpack.c.bf16 %v1050, %v1049
      %v1056 = vpack.c.bf16 %v1052, %v1051
      %1057 = vmatpush.bf16.msra.mxu0 %v556
      %1058 = vmatpush.bf16.msra.mxu0 %v555
      %1059 = vmatpush.bf16.msra.mxu0 %v554
      %1060 = vmatpush.bf16.msra.mxu0 %v553
      %1061 = vmatpush.bf16.msra.mxu0 %v552
      %1062 = vmatpush.bf16.msra.mxu0 %v551
      %1063 = vmatpush.bf16.msra.mxu0 %v550
      %1064 = vmatpush.bf16.msra.mxu0 %v549
      %1065 = vmatmul.bf16.gmra.mxu0 %v1012
      %v1066 = vpop.f32.mrf.mxu0
      %v1067 = vadd.f32 %v515, %v1066
      %v1068 = vpop.f32.mrf.mxu0
      %v1069 = vadd.f32 %v515, %v1068
      %1070 = vmatmul.bf16.gmra.mxu0 %v1013
      %v1071 = vpop.f32.mrf.mxu0
      %v1072 = vadd.f32 %v515, %v1071
      %v1073 = vpop.f32.mrf.mxu0
      %v1074 = vadd.f32 %v515, %v1073
      %1075 = vmatmul.bf16.gmra.mxu0 %v1014
      %v1076 = vpop.f32.mrf.mxu0
      %v1077 = vadd.f32 %v515, %v1076
      %v1078 = vpop.f32.mrf.mxu0
      %v1079 = vadd.f32 %v515, %v1078
      %1080 = vmatmul.bf16.gmra.mxu0 %v1015
      %v1081 = vpop.f32.mrf.mxu0
      %v1082 = vadd.f32 %v515, %v1081
      %v1083 = vpop.f32.mrf.mxu0
      %v1084 = vadd.f32 %v515, %v1083
      %1085 = vdwg.mxu0
      %v1086 = vmax.f32 %v1067, 0.0
      %v1087 = vmax.f32 %v1069, 0.0
      %v1088 = vmax.f32 %v1072, 0.0
      %v1089 = vmax.f32 %v1074, 0.0
      %v1090 = vmax.f32 %v1077, 0.0
      %v1091 = vmax.f32 %v1079, 0.0
      %v1092 = vmax.f32 %v1082, 0.0
      %v1093 = vmax.f32 %v1084, 0.0
      %v1094 = vpack.c.bf16 %v1087, %v1086
      %v1095 = vpack.c.bf16 %v1089, %v1088
      %v1096 = vpack.c.bf16 %v1091, %v1090
      %v1097 = vpack.c.bf16 %v1093, %v1092
      %1098 = vmatpush.bf16.msra.mxu0 %v556
      %1099 = vmatpush.bf16.msra.mxu0 %v555
      %1100 = vmatpush.bf16.msra.mxu0 %v554
      %1101 = vmatpush.bf16.msra.mxu0 %v553
      %1102 = vmatpush.bf16.msra.mxu0 %v552
      %1103 = vmatpush.bf16.msra.mxu0 %v551
      %1104 = vmatpush.bf16.msra.mxu0 %v550
      %1105 = vmatpush.bf16.msra.mxu0 %v549
      %1106 = vmatmul.bf16.gmra.mxu0 %v1053
      %v1107 = vpop.f32.mrf.mxu0
      %v1108 = vadd.f32 %v515, %v1107
      %v1109 = vpop.f32.mrf.mxu0
      %v1110 = vadd.f32 %v515, %v1109
      %1111 = vmatmul.bf16.gmra.mxu0 %v1054
      %v1112 = vpop.f32.mrf.mxu0
      %v1113 = vadd.f32 %v515, %v1112
      %v1114 = vpop.f32.mrf.mxu0
      %v1115 = vadd.f32 %v515, %v1114
      %1116 = vmatmul.bf16.gmra.mxu0 %v1055
      %v1117 = vpop.f32.mrf.mxu0
      %v1118 = vadd.f32 %v515, %v1117
      %v1119 = vpop.f32.mrf.mxu0
      %v1120 = vadd.f32 %v515, %v1119
      %1121 = vmatmul.bf16.gmra.mxu0 %v1056
      %v1122 = vpop.f32.mrf.mxu0
      %v1123 = vadd.f32 %v515, %v1122
      %v1124 = vpop.f32.mrf.mxu0
      %v1125 = vadd.f32 %v515, %v1124
      %1126 = vdwg.mxu0
      %v1127 = vmax.f32 %v1108, 0.0
      %v1128 = vmax.f32 %v1110, 0.0
      %v1129 = vmax.f32 %v1113, 0.0
      %v1130 = vmax.f32 %v1115, 0.0
      %v1131 = vmax.f32 %v1118, 0.0
      %v1132 = vmax.f32 %v1120, 0.0
      %v1133 = vmax.f32 %v1123, 0.0
      %v1134 = vmax.f32 %v1125, 0.0
      %v1135 = vpack.c.bf16 %v1128, %v1127
      %v1136 = vpack.c.bf16 %v1130, %v1129
      %v1137 = vpack.c.bf16 %v1132, %v1131
      %v1138 = vpack.c.bf16 %v1134, %v1133
      %1139 = vmatpush.bf16.msra.mxu0 %v556
      %1140 = vmatpush.bf16.msra.mxu0 %v555
      %1141 = vmatpush.bf16.msra.mxu0 %v554
      %1142 = vmatpush.bf16.msra.mxu0 %v553
      %1143 = vmatpush.bf16.msra.mxu0 %v552
      %1144 = vmatpush.bf16.msra.mxu0 %v551
      %1145 = vmatpush.bf16.msra.mxu0 %v550
      %1146 = vmatpush.bf16.msra.mxu0 %v549
      %1147 = vmatmul.bf16.gmra.mxu0 %v1094
      %v1148 = vpop.f32.mrf.mxu0
      %v1149 = vadd.f32 %v515, %v1148
      %v1150 = vpop.f32.mrf.mxu0
      %v1151 = vadd.f32 %v515, %v1150
      %1152 = vmatmul.bf16.gmra.mxu0 %v1095
      %v1153 = vpop.f32.mrf.mxu0
      %v1154 = vadd.f32 %v515, %v1153
      %v1155 = vpop.f32.mrf.mxu0
      %v1156 = vadd.f32 %v515, %v1155
      %1157 = vmatmul.bf16.gmra.mxu0 %v1096
      %v1158 = vpop.f32.mrf.mxu0
      %v1159 = vadd.f32 %v515, %v1158
      %v1160 = vpop.f32.mrf.mxu0
      %v1161 = vadd.f32 %v515, %v1160
      %1162 = vmatmul.bf16.gmra.mxu0 %v1097
      %v1163 = vpop.f32.mrf.mxu0
      %v1164 = vadd.f32 %v515, %v1163
      %v1165 = vpop.f32.mrf.mxu0
      %v1166 = vadd.f32 %v515, %v1165
      %1167 = vdwg.mxu0
      %v1168 = vmax.f32 %v1149, 0.0
      %v1169 = vmax.f32 %v1151, 0.0
      %v1170 = vmax.f32 %v1154, 0.0
      %v1171 = vmax.f32 %v1156, 0.0
      %v1172 = vmax.f32 %v1159, 0.0
      %v1173 = vmax.f32 %v1161, 0.0
      %v1174 = vmax.f32 %v1164, 0.0
      %v1175 = vmax.f32 %v1166, 0.0
      %v1176 = vpack.c.bf16 %v1169, %v1168
      %v1177 = vpack.c.bf16 %v1171, %v1170
      %v1178 = vpack.c.bf16 %v1173, %v1172
      %v1179 = vpack.c.bf16 %v1175, %v1174
      %1180 = vmatpush.bf16.msra.mxu0 %v556
      %1181 = vmatpush.bf16.msra.mxu0 %v555
      %1182 = vmatpush.bf16.msra.mxu0 %v554
      %1183 = vmatpush.bf16.msra.mxu0 %v553
      %1184 = vmatpush.bf16.msra.mxu0 %v552
      %1185 = vmatpush.bf16.msra.mxu0 %v551
      %1186 = vmatpush.bf16.msra.mxu0 %v550
      %1187 = vmatpush.bf16.msra.mxu0 %v549
      %1188 = vmatmul.bf16.gmra.mxu0 %v1135
      %v1189 = vpop.f32.mrf.mxu0
      %v1190 = vadd.f32 %v515, %v1189
      %v1191 = vpop.f32.mrf.mxu0
      %v1192 = vadd.f32 %v515, %v1191
      %1193 = vmatmul.bf16.gmra.mxu0 %v1136
      %v1194 = vpop.f32.mrf.mxu0
      %v1195 = vadd.f32 %v515, %v1194
      %v1196 = vpop.f32.mrf.mxu0
      %v1197 = vadd.f32 %v515, %v1196
      %1198 = vmatmul.bf16.gmra.mxu0 %v1137
      %v1199 = vpop.f32.mrf.mxu0
      %v1200 = vadd.f32 %v515, %v1199
      %v1201 = vpop.f32.mrf.mxu0
      %v1202 = vadd.f32 %v515, %v1201
      %1203 = vmatmul.bf16.gmra.mxu0 %v1138
      %v1204 = vpop.f32.mrf.mxu0
      %v1205 = vadd.f32 %v515, %v1204
      %v1206 = vpop.f32.mrf.mxu0
      %v1207 = vadd.f32 %v515, %v1206
      %1208 = vdwg.mxu0
      %v1209 = vmax.f32 %v1190, 0.0
      %v1210 = vmax.f32 %v1192, 0.0
      %v1211 = vmax.f32 %v1195, 0.0
      %v1212 = vmax.f32 %v1197, 0.0
      %v1213 = vmax.f32 %v1200, 0.0
      %v1214 = vmax.f32 %v1202, 0.0
      %v1215 = vmax.f32 %v1205, 0.0
      %v1216 = vmax.f32 %v1207, 0.0
      %v1217 = vpack.c.bf16 %v1210, %v1209
      %v1218 = vpack.c.bf16 %v1212, %v1211
      %v1219 = vpack.c.bf16 %v1214, %v1213
      %v1220 = vpack.c.bf16 %v1216, %v1215
      %1221 = vmatpush.bf16.msra.mxu0 %v556
      %1222 = vmatpush.bf16.msra.mxu0 %v555
      %1223 = vmatpush.bf16.msra.mxu0 %v554
      %1224 = vmatpush.bf16.msra.mxu0 %v553
      %1225 = vmatpush.bf16.msra.mxu0 %v552
      %1226 = vmatpush.bf16.msra.mxu0 %v551
      %1227 = vmatpush.bf16.msra.mxu0 %v550
      %1228 = vmatpush.bf16.msra.mxu0 %v549
      %1229 = vmatmul.bf16.gmra.mxu0 %v1176
      %v1230 = vpop.f32.mrf.mxu0
      %v1231 = vadd.f32 %v515, %v1230
      %v1232 = vpop.f32.mrf.mxu0
      %v1233 = vadd.f32 %v515, %v1232
      %1234 = vmatmul.bf16.gmra.mxu0 %v1177
      %v1235 = vpop.f32.mrf.mxu0
      %v1236 = vadd.f32 %v515, %v1235
      %v1237 = vpop.f32.mrf.mxu0
      %v1238 = vadd.f32 %v515, %v1237
      %1239 = vmatmul.bf16.gmra.mxu0 %v1178
      %v1240 = vpop.f32.mrf.mxu0
      %v1241 = vadd.f32 %v515, %v1240
      %v1242 = vpop.f32.mrf.mxu0
      %v1243 = vadd.f32 %v515, %v1242
      %1244 = vmatmul.bf16.gmra.mxu0 %v1179
      %v1245 = vpop.f32.mrf.mxu0
      %v1246 = vadd.f32 %v515, %v1245
      %v1247 = vpop.f32.mrf.mxu0
      %v1248 = vadd.f32 %v515, %v1247
      %1249 = vdwg.mxu0
      %v1250 = vmax.f32 %v1231, 0.0
      %v1251 = vmax.f32 %v1233, 0.0
      %v1252 = vmax.f32 %v1236, 0.0
      %v1253 = vmax.f32 %v1238, 0.0
      %v1254 = vmax.f32 %v1241, 0.0
      %v1255 = vmax.f32 %v1243, 0.0
      %v1256 = vmax.f32 %v1246, 0.0
      %v1257 = vmax.f32 %v1248, 0.0
      %v1258 = vpack.c.bf16 %v1251, %v1250
      %v1259 = vpack.c.bf16 %v1253, %v1252
      %v1260 = vpack.c.bf16 %v1255, %v1254
      %v1261 = vpack.c.bf16 %v1257, %v1256
      %1262 = vmatpush.bf16.msra.mxu0 %v556
      %1263 = vmatpush.bf16.msra.mxu0 %v555
      %1264 = vmatpush.bf16.msra.mxu0 %v554
      %1265 = vmatpush.bf16.msra.mxu0 %v553
      %1266 = vmatpush.bf16.msra.mxu0 %v552
      %1267 = vmatpush.bf16.msra.mxu0 %v551
      %1268 = vmatpush.bf16.msra.mxu0 %v550
      %1269 = vmatpush.bf16.msra.mxu0 %v549
      %1270 = vmatmul.bf16.gmra.mxu0 %v1217
      %v1271 = vpop.f32.mrf.mxu0
      %v1272 = vadd.f32 %v515, %v1271
      %v1273 = vpop.f32.mrf.mxu0
      %v1274 = vadd.f32 %v515, %v1273
      %1275 = vmatmul.bf16.gmra.mxu0 %v1218
      %v1276 = vpop.f32.mrf.mxu0
      %v1277 = vadd.f32 %v515, %v1276
      %v1278 = vpop.f32.mrf.mxu0
      %v1279 = vadd.f32 %v515, %v1278
      %1280 = vmatmul.bf16.gmra.mxu0 %v1219
      %v1281 = vpop.f32.mrf.mxu0
      %v1282 = vadd.f32 %v515, %v1281
      %v1283 = vpop.f32.mrf.mxu0
      %v1284 = vadd.f32 %v515, %v1283
      %1285 = vmatmul.bf16.gmra.mxu0 %v1220
      %v1286 = vpop.f32.mrf.mxu0
      %v1287 = vadd.f32 %v515, %v1286
      %v1288 = vpop.f32.mrf.mxu0
      %v1289 = vadd.f32 %v515, %v1288
      %1290 = vdwg.mxu0
      %v1291 = vmax.f32 %v1272, 0.0
      %v1292 = vmax.f32 %v1274, 0.0
      %v1293 = vmax.f32 %v1277, 0.0
      %v1294 = vmax.f32 %v1279, 0.0
      %v1295 = vmax.f32 %v1282, 0.0
      %v1296 = vmax.f32 %v1284, 0.0
      %v1297 = vmax.f32 %v1287, 0.0
      %v1298 = vmax.f32 %v1289, 0.0
      %v1299 = vpack.c.bf16 %v1292, %v1291
      %v1300 = vpack.c.bf16 %v1294, %v1293
      %v1301 = vpack.c.bf16 %v1296, %v1295
      %v1302 = vpack.c.bf16 %v1298, %v1297
      %1303 = vmatpush.bf16.msra.mxu0 %v556
      %1304 = vmatpush.bf16.msra.mxu0 %v555
      %1305 = vmatpush.bf16.msra.mxu0 %v554
      %1306 = vmatpush.bf16.msra.mxu0 %v553
      %1307 = vmatpush.bf16.msra.mxu0 %v552
      %1308 = vmatpush.bf16.msra.mxu0 %v551
      %1309 = vmatpush.bf16.msra.mxu0 %v550
      %1310 = vmatpush.bf16.msra.mxu0 %v549
      %1311 = vmatmul.bf16.gmra.mxu0 %v1258
      %v1312 = vpop.f32.mrf.mxu0
      %v1313 = vadd.f32 %v515, %v1312
      %v1314 = vpop.f32.mrf.mxu0
      %v1315 = vadd.f32 %v515, %v1314
      %1316 = vmatmul.bf16.gmra.mxu0 %v1259
      %v1317 = vpop.f32.mrf.mxu0
      %v1318 = vadd.f32 %v515, %v1317
      %v1319 = vpop.f32.mrf.mxu0
      %v1320 = vadd.f32 %v515, %v1319
      %1321 = vmatmul.bf16.gmra.mxu0 %v1260
      %v1322 = vpop.f32.mrf.mxu0
      %v1323 = vadd.f32 %v515, %v1322
      %v1324 = vpop.f32.mrf.mxu0
      %v1325 = vadd.f32 %v515, %v1324
      %1326 = vmatmul.bf16.gmra.mxu0 %v1261
      %v1327 = vpop.f32.mrf.mxu0
      %v1328 = vadd.f32 %v515, %v1327
      %v1329 = vpop.f32.mrf.mxu0
      %v1330 = vadd.f32 %v515, %v1329
      %1331 = vdwg.mxu0
      %v1332 = vmax.f32 %v1313, 0.0
      %v1333 = vmax.f32 %v1315, 0.0
      %v1334 = vmax.f32 %v1318, 0.0
      %v1335 = vmax.f32 %v1320, 0.0
      %v1336 = vmax.f32 %v1323, 0.0
      %v1337 = vmax.f32 %v1325, 0.0
      %v1338 = vmax.f32 %v1328, 0.0
      %v1339 = vmax.f32 %v1330, 0.0
      %v1340 = vpack.c.bf16 %v1333, %v1332
      %v1341 = vpack.c.bf16 %v1335, %v1334
      %v1342 = vpack.c.bf16 %v1337, %v1336
      %v1343 = vpack.c.bf16 %v1339, %v1338
      %1344 = vmatpush.bf16.msra.mxu0 %v556
      %1345 = vmatpush.bf16.msra.mxu0 %v555
      %1346 = vmatpush.bf16.msra.mxu0 %v554
      %1347 = vmatpush.bf16.msra.mxu0 %v553
      %1348 = vmatpush.bf16.msra.mxu0 %v552
      %1349 = vmatpush.bf16.msra.mxu0 %v551
      %1350 = vmatpush.bf16.msra.mxu0 %v550
      %1351 = vmatpush.bf16.msra.mxu0 %v549
      %1352 = vmatmul.bf16.gmra.mxu0 %v1299
      %v1353 = vpop.f32.mrf.mxu0
      %v1354 = vadd.f32 %v515, %v1353
      %v1355 = vpop.f32.mrf.mxu0
      %v1356 = vadd.f32 %v515, %v1355
      %1357 = vmatmul.bf16.gmra.mxu0 %v1300
      %v1358 = vpop.f32.mrf.mxu0
      %v1359 = vadd.f32 %v515, %v1358
      %v1360 = vpop.f32.mrf.mxu0
      %v1361 = vadd.f32 %v515, %v1360
      %1362 = vmatmul.bf16.gmra.mxu0 %v1301
      %v1363 = vpop.f32.mrf.mxu0
      %v1364 = vadd.f32 %v515, %v1363
      %v1365 = vpop.f32.mrf.mxu0
      %v1366 = vadd.f32 %v515, %v1365
      %1367 = vmatmul.bf16.gmra.mxu0 %v1302
      %v1368 = vpop.f32.mrf.mxu0
      %v1369 = vadd.f32 %v515, %v1368
      %v1370 = vpop.f32.mrf.mxu0
      %v1371 = vadd.f32 %v515, %v1370
      %1372 = vdwg.mxu0
      %v1373 = vmax.f32 %v1354, 0.0
      %v1374 = vmax.f32 %v1356, 0.0
      %v1375 = vmax.f32 %v1359, 0.0
      %v1376 = vmax.f32 %v1361, 0.0
      %v1377 = vmax.f32 %v1364, 0.0
      %v1378 = vmax.f32 %v1366, 0.0
      %v1379 = vmax.f32 %v1369, 0.0
      %v1380 = vmax.f32 %v1371, 0.0
      %v1381 = vpack.c.bf16 %v1374, %v1373
      %v1382 = vpack.c.bf16 %v1376, %v1375
      %v1383 = vpack.c.bf16 %v1378, %v1377
      %v1384 = vpack.c.bf16 %v1380, %v1379
      %1385 = vmatpush.bf16.msra.mxu0 %v556
      %1386 = vmatpush.bf16.msra.mxu0 %v555
      %1387 = vmatpush.bf16.msra.mxu0 %v554
      %1388 = vmatpush.bf16.msra.mxu0 %v553
      %1389 = vmatpush.bf16.msra.mxu0 %v552
      %1390 = vmatpush.bf16.msra.mxu0 %v551
      %1391 = vmatpush.bf16.msra.mxu0 %v550
      %1392 = vmatpush.bf16.msra.mxu0 %v549
      %1393 = vmatmul.bf16.gmra.mxu0 %v1340
      %v1394 = vpop.f32.mrf.mxu0
      %v1395 = vadd.f32 %v515, %v1394
      %v1396 = vpop.f32.mrf.mxu0
      %v1397 = vadd.f32 %v515, %v1396
      %1398 = vmatmul.bf16.gmra.mxu0 %v1341
      %v1399 = vpop.f32.mrf.mxu0
      %v1400 = vadd.f32 %v515, %v1399
      %v1401 = vpop.f32.mrf.mxu0
      %v1402 = vadd.f32 %v515, %v1401
      %1403 = vmatmul.bf16.gmra.mxu0 %v1342
      %v1404 = vpop.f32.mrf.mxu0
      %v1405 = vadd.f32 %v515, %v1404
      %v1406 = vpop.f32.mrf.mxu0
      %v1407 = vadd.f32 %v515, %v1406
      %1408 = vmatmul.bf16.gmra.mxu0 %v1343
      %v1409 = vpop.f32.mrf.mxu0
      %v1410 = vadd.f32 %v515, %v1409
      %v1411 = vpop.f32.mrf.mxu0
      %v1412 = vadd.f32 %v515, %v1411
      %1413 = vdwg.mxu0
      %v1414 = vmax.f32 %v1395, 0.0
      %v1415 = vmax.f32 %v1397, 0.0
      %v1416 = vmax.f32 %v1400, 0.0
      %v1417 = vmax.f32 %v1402, 0.0
      %v1418 = vmax.f32 %v1405, 0.0
      %v1419 = vmax.f32 %v1407, 0.0
      %v1420 = vmax.f32 %v1410, 0.0
      %v1421 = vmax.f32 %v1412, 0.0
      %v1422 = vpack.c.bf16 %v1415, %v1414
      %v1423 = vpack.c.bf16 %v1417, %v1416
      %v1424 = vpack.c.bf16 %v1419, %v1418
      %v1425 = vpack.c.bf16 %v1421, %v1420
      %1426 = vmatpush.bf16.msra.mxu0 %v556
      %1427 = vmatpush.bf16.msra.mxu0 %v555
      %1428 = vmatpush.bf16.msra.mxu0 %v554
      %1429 = vmatpush.bf16.msra.mxu0 %v553
      %1430 = vmatpush.bf16.msra.mxu0 %v552
      %1431 = vmatpush.bf16.msra.mxu0 %v551
      %1432 = vmatpush.bf16.msra.mxu0 %v550
      %1433 = vmatpush.bf16.msra.mxu0 %v549
      %1434 = vmatmul.bf16.gmra.mxu0 %v1381
      %v1435 = vpop.f32.mrf.mxu0
      %v1436 = vadd.f32 %v515, %v1435
      %v1437 = vpop.f32.mrf.mxu0
      %v1438 = vadd.f32 %v515, %v1437
      %1439 = vmatmul.bf16.gmra.mxu0 %v1382
      %v1440 = vpop.f32.mrf.mxu0
      %v1441 = vadd.f32 %v515, %v1440
      %v1442 = vpop.f32.mrf.mxu0
      %v1443 = vadd.f32 %v515, %v1442
      %1444 = vmatmul.bf16.gmra.mxu0 %v1383
      %v1445 = vpop.f32.mrf.mxu0
      %v1446 = vadd.f32 %v515, %v1445
      %v1447 = vpop.f32.mrf.mxu0
      %v1448 = vadd.f32 %v515, %v1447
      %1449 = vmatmul.bf16.gmra.mxu0 %v1384
      %v1450 = vpop.f32.mrf.mxu0
      %v1451 = vadd.f32 %v515, %v1450
      %v1452 = vpop.f32.mrf.mxu0
      %v1453 = vadd.f32 %v515, %v1452
      %1454 = vdwg.mxu0
      %v1455 = vmax.f32 %v1436, 0.0
      %v1456 = vmax.f32 %v1438, 0.0
      %v1457 = vmax.f32 %v1441, 0.0
      %v1458 = vmax.f32 %v1443, 0.0
      %v1459 = vmax.f32 %v1446, 0.0
      %v1460 = vmax.f32 %v1448, 0.0
      %v1461 = vmax.f32 %v1451, 0.0
      %v1462 = vmax.f32 %v1453, 0.0
      %v1463 = vpack.c.bf16 %v1456, %v1455
      %v1464 = vpack.c.bf16 %v1458, %v1457
      %v1465 = vpack.c.bf16 %v1460, %v1459
      %v1466 = vpack.c.bf16 %v1462, %v1461
      %1467 = vmatpush.bf16.msra.mxu0 %v556
      %1468 = vmatpush.bf16.msra.mxu0 %v555
      %1469 = vmatpush.bf16.msra.mxu0 %v554
      %1470 = vmatpush.bf16.msra.mxu0 %v553
      %1471 = vmatpush.bf16.msra.mxu0 %v552
      %1472 = vmatpush.bf16.msra.mxu0 %v551
      %1473 = vmatpush.bf16.msra.mxu0 %v550
      %1474 = vmatpush.bf16.msra.mxu0 %v549
      %1475 = vmatmul.bf16.gmra.mxu0 %v1422
      %v1476 = vpop.f32.mrf.mxu0
      %v1477 = vadd.f32 %v515, %v1476
      %v1478 = vpop.f32.mrf.mxu0
      %v1479 = vadd.f32 %v515, %v1478
      %1480 = vmatmul.bf16.gmra.mxu0 %v1423
      %v1481 = vpop.f32.mrf.mxu0
      %v1482 = vadd.f32 %v515, %v1481
      %v1483 = vpop.f32.mrf.mxu0
      %v1484 = vadd.f32 %v515, %v1483
      %1485 = vmatmul.bf16.gmra.mxu0 %v1424
      %v1486 = vpop.f32.mrf.mxu0
      %v1487 = vadd.f32 %v515, %v1486
      %v1488 = vpop.f32.mrf.mxu0
      %v1489 = vadd.f32 %v515, %v1488
      %1490 = vmatmul.bf16.gmra.mxu0 %v1425
      %v1491 = vpop.f32.mrf.mxu0
      %v1492 = vadd.f32 %v515, %v1491
      %v1493 = vpop.f32.mrf.mxu0
      %v1494 = vadd.f32 %v515, %v1493
      %1495 = vdwg.mxu0
      %v1496 = vmax.f32 %v1477, 0.0
      %v1497 = vmax.f32 %v1479, 0.0
      %v1498 = vmax.f32 %v1482, 0.0
      %v1499 = vmax.f32 %v1484, 0.0
      %v1500 = vmax.f32 %v1487, 0.0
      %v1501 = vmax.f32 %v1489, 0.0
      %v1502 = vmax.f32 %v1492, 0.0
      %v1503 = vmax.f32 %v1494, 0.0
      %v1504 = vpack.c.bf16 %v1497, %v1496
      %v1505 = vpack.c.bf16 %v1499, %v1498
      %v1506 = vpack.c.bf16 %v1501, %v1500
      %v1507 = vpack.c.bf16 %v1503, %v1502
      %1508 = vmatpush.bf16.msra.mxu0 %v556
      %1509 = vmatpush.bf16.msra.mxu0 %v555
      %1510 = vmatpush.bf16.msra.mxu0 %v554
      %1511 = vmatpush.bf16.msra.mxu0 %v553
      %1512 = vmatpush.bf16.msra.mxu0 %v552
      %1513 = vmatpush.bf16.msra.mxu0 %v551
      %1514 = vmatpush.bf16.msra.mxu0 %v550
      %1515 = vmatpush.bf16.msra.mxu0 %v549
      %1516 = vmatmul.bf16.gmra.mxu0 %v1463
      %v1517 = vpop.f32.mrf.mxu0
      %v1518 = vadd.f32 %v515, %v1517
      %v1519 = vpop.f32.mrf.mxu0
      %v1520 = vadd.f32 %v515, %v1519
      %1521 = vmatmul.bf16.gmra.mxu0 %v1464
      %v1522 = vpop.f32.mrf.mxu0
      %v1523 = vadd.f32 %v515, %v1522
      %v1524 = vpop.f32.mrf.mxu0
      %v1525 = vadd.f32 %v515, %v1524
      %1526 = vmatmul.bf16.gmra.mxu0 %v1465
      %v1527 = vpop.f32.mrf.mxu0
      %v1528 = vadd.f32 %v515, %v1527
      %v1529 = vpop.f32.mrf.mxu0
      %v1530 = vadd.f32 %v515, %v1529
      %1531 = vmatmul.bf16.gmra.mxu0 %v1466
      %v1532 = vpop.f32.mrf.mxu0
      %v1533 = vadd.f32 %v515, %v1532
      %v1534 = vpop.f32.mrf.mxu0
      %v1535 = vadd.f32 %v515, %v1534
      %1536 = vdwg.mxu0
      %v1537 = vmax.f32 %v1518, 0.0
      %v1538 = vmax.f32 %v1520, 0.0
      %v1539 = vmax.f32 %v1523, 0.0
      %v1540 = vmax.f32 %v1525, 0.0
      %v1541 = vmax.f32 %v1528, 0.0
      %v1542 = vmax.f32 %v1530, 0.0
      %v1543 = vmax.f32 %v1533, 0.0
      %v1544 = vmax.f32 %v1535, 0.0
      %v1545 = vpack.c.bf16 %v1538, %v1537
      %v1546 = vpack.c.bf16 %v1540, %v1539
      %v1547 = vpack.c.bf16 %v1542, %v1541
      %v1548 = vpack.c.bf16 %v1544, %v1543
      %1549 = vmatpush.bf16.msra.mxu0 %v556
      %1550 = vmatpush.bf16.msra.mxu0 %v555
      %1551 = vmatpush.bf16.msra.mxu0 %v554
      %1552 = vmatpush.bf16.msra.mxu0 %v553
      %1553 = vmatpush.bf16.msra.mxu0 %v552
      %1554 = vmatpush.bf16.msra.mxu0 %v551
      %1555 = vmatpush.bf16.msra.mxu0 %v550
      %1556 = vmatpush.bf16.msra.mxu0 %v549
      %1557 = vmatmul.bf16.gmra.mxu0 %v1504
      %v1558 = vpop.f32.mrf.mxu0
      %v1559 = vadd.f32 %v515, %v1558
      %v1560 = vpop.f32.mrf.mxu0
      %v1561 = vadd.f32 %v515, %v1560
      %1562 = vmatmul.bf16.gmra.mxu0 %v1505
      %v1563 = vpop.f32.mrf.mxu0
      %v1564 = vadd.f32 %v515, %v1563
      %v1565 = vpop.f32.mrf.mxu0
      %v1566 = vadd.f32 %v515, %v1565
      %1567 = vmatmul.bf16.gmra.mxu0 %v1506
      %v1568 = vpop.f32.mrf.mxu0
      %v1569 = vadd.f32 %v515, %v1568
      %v1570 = vpop.f32.mrf.mxu0
      %v1571 = vadd.f32 %v515, %v1570
      %1572 = vmatmul.bf16.gmra.mxu0 %v1507
      %v1573 = vpop.f32.mrf.mxu0
      %v1574 = vadd.f32 %v515, %v1573
      %v1575 = vpop.f32.mrf.mxu0
      %v1576 = vadd.f32 %v515, %v1575
      %1577 = vdwg.mxu0
      %v1578 = vmax.f32 %v1559, 0.0
      %v1579 = vmax.f32 %v1561, 0.0
      %v1580 = vmax.f32 %v1564, 0.0
      %v1581 = vmax.f32 %v1566, 0.0
      %v1582 = vmax.f32 %v1569, 0.0
      %v1583 = vmax.f32 %v1571, 0.0
      %v1584 = vmax.f32 %v1574, 0.0
      %v1585 = vmax.f32 %v1576, 0.0
      %v1586 = vpack.c.bf16 %v1579, %v1578
      %v1587 = vpack.c.bf16 %v1581, %v1580
      %v1588 = vpack.c.bf16 %v1583, %v1582
      %v1589 = vpack.c.bf16 %v1585, %v1584
      %1590 = vmatpush.bf16.msra.mxu0 %v556
      %1591 = vmatpush.bf16.msra.mxu0 %v555
      %1592 = vmatpush.bf16.msra.mxu0 %v554
      %1593 = vmatpush.bf16.msra.mxu0 %v553
      %1594 = vmatpush.bf16.msra.mxu0 %v552
      %1595 = vmatpush.bf16.msra.mxu0 %v551
      %1596 = vmatpush.bf16.msra.mxu0 %v550
      %1597 = vmatpush.bf16.msra.mxu0 %v549
      %1598 = vmatmul.bf16.gmra.mxu0 %v1545
      %v1599 = vpop.f32.mrf.mxu0
      %v1600 = vadd.f32 %v515, %v1599
      %v1601 = vpop.f32.mrf.mxu0
      %v1602 = vadd.f32 %v515, %v1601
      %1603 = vmatmul.bf16.gmra.mxu0 %v1546
      %v1604 = vpop.f32.mrf.mxu0
      %v1605 = vadd.f32 %v515, %v1604
      %v1606 = vpop.f32.mrf.mxu0
      %v1607 = vadd.f32 %v515, %v1606
      %1608 = vmatmul.bf16.gmra.mxu0 %v1547
      %v1609 = vpop.f32.mrf.mxu0
      %v1610 = vadd.f32 %v515, %v1609
      %v1611 = vpop.f32.mrf.mxu0
      %v1612 = vadd.f32 %v515, %v1611
      %1613 = vmatmul.bf16.gmra.mxu0 %v1548
      %v1614 = vpop.f32.mrf.mxu0
      %v1615 = vadd.f32 %v515, %v1614
      %v1616 = vpop.f32.mrf.mxu0
      %v1617 = vadd.f32 %v515, %v1616
      %1618 = vdwg.mxu0
      %v1619 = vmax.f32 %v1600, 0.0
      %v1620 = vmax.f32 %v1602, 0.0
      %v1621 = vmax.f32 %v1605, 0.0
      %v1622 = vmax.f32 %v1607, 0.0
      %v1623 = vmax.f32 %v1610, 0.0
      %v1624 = vmax.f32 %v1612, 0.0
      %v1625 = vmax.f32 %v1615, 0.0
      %v1626 = vmax.f32 %v1617, 0.0
      %v1627 = vpack.c.bf16 %v1620, %v1619
      %v1628 = vpack.c.bf16 %v1622, %v1621
      %v1629 = vpack.c.bf16 %v1624, %v1623
      %v1630 = vpack.c.bf16 %v1626, %v1625
      %v1632 = vperm.slane %v332, 0
      %v1650 = vunpack.c.l.b16 %v316
      %v1651 = vunpack.c.l.b16 %v317
      %v1652 = vunpack.c.l.b16 %v318
      %v1653 = vunpack.c.l.b16 %v319
      %v1654 = vunpack.c.l.b16 %v320
      %v1655 = vunpack.c.l.b16 %v321
      %v1656 = vunpack.c.l.b16 %v322
      %v1657 = vunpack.c.l.b16 %v323
      %v1658 = vunpack.c.l.b16 %v324
      %v1659 = vunpack.c.l.b16 %v325
      %v1660 = vunpack.c.l.b16 %v326
      %v1661 = vunpack.c.l.b16 %v327
      %v1662 = vunpack.c.l.b16 %v328
      %v1663 = vunpack.c.l.b16 %v329
      %v1664 = vunpack.c.l.b16 %v330
      %v1665 = vunpack.c.l.b16 %v331
      %v1666 = vpack.c.b16 %v1651, %v1650
      %v1667 = vpack.c.b16 %v1653, %v1652
      %v1668 = vpack.c.b16 %v1655, %v1654
      %v1669 = vpack.c.b16 %v1657, %v1656
      %v1670 = vpack.c.b16 %v1659, %v1658
      %v1671 = vpack.c.b16 %v1661, %v1660
      %v1672 = vpack.c.b16 %v1663, %v1662
      %v1673 = vpack.c.b16 %v1665, %v1664
      %1682 = vmatpush.bf16.msra.mxu0 %v1673
      %1683 = vmatpush.bf16.msra.mxu0 %v1672
      %1684 = vmatpush.bf16.msra.mxu0 %v1671
      %1685 = vmatpush.bf16.msra.mxu0 %v1670
      %1686 = vmatpush.bf16.msra.mxu0 %v1669
      %1687 = vmatpush.bf16.msra.mxu0 %v1668
      %1688 = vmatpush.bf16.msra.mxu0 %v1667
      %1689 = vmatpush.bf16.msra.mxu0 %v1666
      %1690 = vmatmul.bf16.gmra.mxu0 %v1586
      %v1691 = vpop.f32.mrf.mxu0
      %v1692 = vadd.f32 %v1632, %v1691
      %v1693 = vpop.f32.mrf.mxu0
      %v1694 = vadd.f32 %v1632, %v1693
      %1695 = vmatmul.bf16.gmra.mxu0 %v1587
      %v1696 = vpop.f32.mrf.mxu0
      %v1697 = vadd.f32 %v1632, %v1696
      %v1698 = vpop.f32.mrf.mxu0
      %v1699 = vadd.f32 %v1632, %v1698
      %1700 = vmatmul.bf16.gmra.mxu0 %v1588
      %v1701 = vpop.f32.mrf.mxu0
      %v1702 = vadd.f32 %v1632, %v1701
      %v1703 = vpop.f32.mrf.mxu0
      %v1704 = vadd.f32 %v1632, %v1703
      %1705 = vmatmul.bf16.gmra.mxu0 %v1589
      %v1706 = vpop.f32.mrf.mxu0
      %v1707 = vadd.f32 %v1632, %v1706
      %v1708 = vpop.f32.mrf.mxu0
      %v1709 = vadd.f32 %v1632, %v1708
      %1710 = vdwg.mxu0
      %v1711 = vpack.c.bf16 %v1692, %v1692
      %v1712 = vpack.c.bf16 %v1694, %v1694
      %v1713 = vpack.c.bf16 %v1697, %v1697
      %v1714 = vpack.c.bf16 %v1699, %v1699
      %v1715 = vpack.c.bf16 %v1702, %v1702
      %v1716 = vpack.c.bf16 %v1704, %v1704
      %v1717 = vpack.c.bf16 %v1707, %v1707
      %v1718 = vpack.c.bf16 %v1709, %v1709
      %1719 = vst [vmem:[%s280] sm:$0xf] %v1711
      %1720 = vst [vmem:[%s280 + $0x4] sm:$0xf] %v1712
      %1721 = vst [vmem:[%s280 + $0x8] sm:$0xf] %v1713
      %1722 = vst [vmem:[%s280 + $0xc] sm:$0xf] %v1714
      %1723 = vst [vmem:[%s280 + $0x10] sm:$0xf] %v1715
      %1724 = vst [vmem:[%s280 + $0x14] sm:$0xf] %v1716
      %1725 = vst [vmem:[%s280 + $0x18] sm:$0xf] %v1717
      %1726 = vst [vmem:[%s280 + $0x1c] sm:$0xf] %v1718
      %1727 = vmatpush.bf16.msra.mxu0 %v1673
      %1728 = vmatpush.bf16.msra.mxu0 %v1672
      %1729 = vmatpush.bf16.msra.mxu0 %v1671
      %1730 = vmatpush.bf16.msra.mxu0 %v1670
      %1731 = vmatpush.bf16.msra.mxu0 %v1669
      %1732 = vmatpush.bf16.msra.mxu0 %v1668
      %1733 = vmatpush.bf16.msra.mxu0 %v1667
      %1734 = vmatpush.bf16.msra.mxu0 %v1666
      %1735 = vmatmul.bf16.gmra.mxu0 %v1627
      %v1736 = vpop.f32.mrf.mxu0
      %v1737 = vadd.f32 %v1632, %v1736
      %v1738 = vpop.f32.mrf.mxu0
      %v1739 = vadd.f32 %v1632, %v1738
      %1740 = vmatmul.bf16.gmra.mxu0 %v1628
      %v1741 = vpop.f32.mrf.mxu0
      %v1742 = vadd.f32 %v1632, %v1741
      %v1743 = vpop.f32.mrf.mxu0
      %v1744 = vadd.f32 %v1632, %v1743
      %1745 = vmatmul.bf16.gmra.mxu0 %v1629
      %v1746 = vpop.f32.mrf.mxu0
      %v1747 = vadd.f32 %v1632, %v1746
      %v1748 = vpop.f32.mrf.mxu0
      %v1749 = vadd.f32 %v1632, %v1748
      %1750 = vmatmul.bf16.gmra.mxu0 %v1630
      %v1751 = vpop.f32.mrf.mxu0
      %v1752 = vadd.f32 %v1632, %v1751
      %v1753 = vpop.f32.mrf.mxu0
      %v1754 = vadd.f32 %v1632, %v1753
      %1755 = vdwg.mxu0
      %v1756 = vpack.c.bf16 %v1737, %v1737
      %v1757 = vpack.c.bf16 %v1739, %v1739
      %v1758 = vpack.c.bf16 %v1742, %v1742
      %v1759 = vpack.c.bf16 %v1744, %v1744
      %v1760 = vpack.c.bf16 %v1747, %v1747
      %v1761 = vpack.c.bf16 %v1749, %v1749
      %v1762 = vpack.c.bf16 %v1752, %v1752
      %v1763 = vpack.c.bf16 %v1754, %v1754
      %1764 = vst [vmem:[%s280 + $0x20] sm:$0xf] %v1756
      %1765 = vst [vmem:[%s280 + $0x24] sm:$0xf] %v1757
      %1766 = vst [vmem:[%s280 + $0x28] sm:$0xf] %v1758
      %1767 = vst [vmem:[%s280 + $0x2c] sm:$0xf] %v1759
      %1768 = vst [vmem:[%s280 + $0x30] sm:$0xf] %v1760
      %1769 = vst [vmem:[%s280 + $0x34] sm:$0xf] %v1761
      %1770 = vst [vmem:[%s280 + $0x38] sm:$0xf] %v1762
      %1771 = vst [vmem:[%s280 + $0x3c] sm:$0xf] %v1763
      %s1772 = smul.u32 16, %s18
      %p1773 = scmp.lt.s32.totalorder %s1772, 31
      %s1774 = scalar_select %p1773, %s1772, 31
      %s1775 = smul.addr %s1774, 4
      %s1776 = scalar_lea.vmem %s7, %s1775
      // Predicated region
      $region49: #{ann_forward.1} parent=47 // pred_check
        %p1777 = pneg %p188
      $region50: #{ann_forward.1} parent=47 // pred_check_branch
        %1779 = sbr.rel (%p1777) target = $region52
      $region51: #{ann_forward.1} parent=47 // pred_region
        %s1780 = smul.u32 16, %s18
      $region52: #{ann_forward.1} parent=47 // pred_fallthru
        _
    $region48: #{ann_forward.1} parent=5 // pred_fallthru
      _
    %p1781 = scmp.le.s32.totalorder 2, %s13
    // Predicated region
    $region53: #{ann_forward.1} parent=5 // pred_check
      %p1782 = pneg %p1781
    $region54: #{ann_forward.1} parent=5 // pred_check_branch
      %1784 = sbr.rel (%p1782) target = $region56
    $region55: #{ann_forward.1} parent=5 // pred_region
      %s1785 = ssub.s32 %s13, 2
      // Predicated region
      $region57: #{ann_forward.1} parent=55 // pred_check
        %p1786 = pneg %p194
      $region58: #{ann_forward.1} parent=55 // pred_check_branch
        %1788 = sbr.rel (%p1786) target = $region60
      $region59: #{ann_forward.1} parent=55 // pred_region
        %s1789 = smul.u32 16, %s19
        %p1790 = scmp.lt.s32.totalorder %s1789, 31
        %s1791 = scalar_select %p1790, %s1789, 31
        %s1792 = smul.addr %s1791, 4
        %s1793 = scalar_lea.vmem %s7, %s1792
      $region60: #{ann_forward.1} parent=55 // pred_fallthru
        _
    $region56: #{ann_forward.1} parent=5 // pred_fallthru
      _
  $region6: #{ann_forward.1} parent=0 // loop_footer
    %s17 = sadd.s32 1, %s13
  $region7: #{ann_forward.1} parent=0 // loop_footer_branch
    %12 = sbr.rel target = $region3
  $region8: #{ann_forward.1} parent=0 // loop_exit
    _

</llo_original>
